<compile_context>
chip_gen: v6e
topology: v6e:2x2x1
jax: 0.10.0
libtpu: 0.0.40
codegen_flags: <defaults>
</compile_context>

<pallas_src>
import functools

import jax
import jax.numpy as jnp
from jax.experimental import pallas as pl
from jax.experimental.pallas import tpu as pltpu

_H1, _H2 = 400, 300          # logical hidden sizes (PyTorch spec)
_H1_PAD, _H2_PAD = 512, 384  # lane-aligned (multiples of 128)
_LANE = 128
_SUBLANE = 8


def _round_up(n, m):
    return (n + m - 1) // m * m


def _actor_kernel(x_ref, w1_ref, b1_ref, w2_ref, b2_ref, w3_ref, b3_ref,
                  o_ref, *, max_action):
    # Layer 1: Linear + ReLU.  MXU matmul (bf16 feeds when weights are bf16),
    # f32 accumulation; bias/ReLU epilogue in f32 (friendly to v5e's VPU).
    h1 = jnp.dot(x_ref[...].astype(w1_ref.dtype), w1_ref[...],
                 preferred_element_type=jnp.float32)
    h1 = jnp.maximum(h1 + b1_ref[...], 0.0)
    # Layer 2: Linear + ReLU.
    h2 = jnp.dot(h1.astype(w2_ref.dtype), w2_ref[...],
                 preferred_element_type=jnp.float32)
    h2 = jnp.maximum(h2 + b2_ref[...], 0.0)
    # Layer 3: Linear + tanh (EUP), scaled by max_action.
    h3 = jnp.dot(h2.astype(w3_ref.dtype), w3_ref[...],
                 preferred_element_type=jnp.float32)
    o_ref[...] = (jnp.tanh(h3 + b3_ref[...]) * max_action).astype(o_ref.dtype)


def init_actor_params(key, state_dim, action_dim):
    """PyTorch nn.Linear default init: U[-1/sqrt(fan_in), 1/sqrt(fan_in)].

    Weights are stored transposed vs. PyTorch, i.e. (in_features, out_features),
    biases as (1, out_features) rows (broadcast over batch inside the kernel).
    """
    dims = [(state_dim, _H1), (_H1, _H2), (_H2, action_dim)]
    params = {}
    for i, (fan_in, fan_out) in enumerate(dims, start=1):
        key, kw, kb = jax.random.split(key, 3)
        bound = 1.0 / jnp.sqrt(jnp.float32(fan_in))
        params[f"w{i}"] = jax.random.uniform(
            kw, (fan_in, fan_out), jnp.float32, -bound, bound)
        params[f"b{i}"] = jax.random.uniform(
            kb, (1, fan_out), jnp.float32, -bound, bound)
    return params


def pad_actor_params(params, weight_dtype=jnp.bfloat16):
    """Zero-pad state_dim/action_dim to 128 lanes and hidden dims to 512/384.

    Padding is exact: padded bias lanes are 0, ReLU(0)=0, and padded rows of
    the next weight matrix are 0, so logical outputs are unchanged.
    Weights default to bf16 (halves weight DMA, bf16-native MXU on all
    generations); biases stay f32 so the epilogue math stays in f32.
    Pass weight_dtype=jnp.float32 for exact parity with the f32 reference.
    """
    state_dim = params["w1"].shape[0]
    action_dim = params["w3"].shape[1]
    s_pad = _round_up(state_dim, _LANE)
    a_pad = _round_up(action_dim, _LANE)

    def pad2(a, rows, cols):
        return jnp.pad(a, ((0, rows - a.shape[0]), (0, cols - a.shape[1])))

    padded = {
        "w1": pad2(params["w1"], s_pad, _H1_PAD).astype(weight_dtype),
        "b1": pad2(params["b1"], 1, _H1_PAD),
        "w2": pad2(params["w2"], _H1_PAD, _H2_PAD).astype(weight_dtype),
        "b2": pad2(params["b2"], 1, _H2_PAD),
        "w3": pad2(params["w3"], _H2_PAD, a_pad).astype(weight_dtype),
        "b3": pad2(params["b3"], 1, a_pad),
    }
    return padded, action_dim


@functools.lru_cache(maxsize=1)
def _tpu_tile_caps():
    """(max batch tile, TensorCores per chip) for the current backend."""
    try:
        kind = jax.devices()[0].device_kind.lower()
    except Exception:
        kind = ""
    if "v5" in kind:       # v5e: 4x128x128 MXU, 1 TC, single vst slot
        return 128, 1
    if "v6" in kind:       # v6e: 2x256x256 MXU, 1 TC
        return 256, 1
    if "v7" in kind:       # v7x: 2x256x256 MXU, 2 TCs
        return 256, 2
    return 128, 2          # conservative default for other/unknown chips


def _pick_batch_tile(batch, tb_max, num_cores):
    if batch <= _LANE:
        # Single tile; round up to a full sublane group.
        return _round_up(max(batch, 1), _SUBLANE)
    # Large batch: make the grid have >= 2*num_cores steps so the "parallel"
    # batch axis actually shards across TensorCores, and cap the tile at the
    # generation's MXU height.
    target_steps = max(2 * num_cores, pl.cdiv(batch, tb_max))
    tb = _round_up(pl.cdiv(batch, target_steps), _SUBLANE)
    return max(_SUBLANE, min(tb, tb_max))


def actor_forward(x, padded_params, action_dim, max_action, *,
                  slice_output=True):
    """Actor MLP forward pass in a single fused Pallas kernel.

    x: (batch, state_dim) float32
    padded_params: output of pad_actor_params
    Returns (batch, action_dim) float32, or the padded (batch_p, 128) buffer
    when slice_output=False (saves an extra slice op in tight inference loops).
    """
    w1, b1 = padded_params["w1"], padded_params["b1"]
    w2, b2 = padded_params["w2"], padded_params["b2"]
    w3, b3 = padded_params["w3"], padded_params["b3"]
    batch, state_dim = x.shape
    s_pad = w1.shape[0]
    a_pad = w3.shape[1]

    tb_max, num_cores = _tpu_tile_caps()
    tb = _pick_batch_tile(batch, tb_max, num_cores)
    batch_p = _round_up(batch, tb)

    # Lane-dense x: zero-pad features to the padded w1 rows and the batch to a
    # whole number of tiles (padded rows/columns are exact, sliced off below).
    if batch_p != batch or s_pad != state_dim:
        x = jnp.pad(x, ((0, batch_p - batch), (0, s_pad - state_dim)))
    grid = (batch_p // tb,)

    weights = (w1, b1, w2, b2, w3, b3)
    weight_bytes = sum(int(a.size) * a.dtype.itemsize for a in weights)
    cost = pl.CostEstimate(
        flops=2 * batch_p * (s_pad * _H1_PAD + _H1_PAD * _H2_PAD
                             + _H2_PAD * a_pad),
        transcendentals=batch_p * a_pad,    # tanh runs on the padded lanes too
        bytes_accessed=weight_bytes + 4 * batch_p * (s_pad + a_pad),
    )
    kernel = functools.partial(_actor_kernel, max_action=float(max_action))

    def call(single_buffer_weights):
        def resident(a):
            # Weights/biases use the same block every grid step -> VMEM
            # resident.  Constant block index => double-buffering is waste.
            if single_buffer_weights:
                return pl.BlockSpec(a.shape, lambda i: (0, 0),
                                    pipeline_mode=pl.Buffered(1))
            return pl.BlockSpec(a.shape, lambda i: (0, 0))

        return pl.pallas_call(
            kernel,
            out_shape=jax.ShapeDtypeStruct((batch_p, a_pad), jnp.float32),
            grid=grid,
            in_specs=[pl.BlockSpec((tb, s_pad), lambda i: (i, 0))]
                     + [resident(a) for a in weights],
            out_specs=pl.BlockSpec((tb, a_pad), lambda i: (i, 0)),
            compiler_params=pltpu.CompilerParams(
                dimension_semantics=("parallel",)),
            cost_estimate=cost,
        )(x, *weights)

    if hasattr(pl, "Buffered"):
        try:
            out = call(True)
        except Exception:
            # pipeline_mode / Buffered(1) not supported on this build: the hint
            # is a pure VMEM optimization, fall back to default buffering.
            out = call(False)
    else:
        out = call(False)

    if not slice_output:
        return out
    # Slice the lane-dense padded output back to the logical action_dim.
    return out[:batch, :action_dim]


def actor_reference(x, params, max_action):
    h1 = jnp.maximum(x @ params["w1"] + params["b1"], 0.0)
    h2 = jnp.maximum(h1 @ params["w2"] + params["b2"], 0.0)
    return jnp.tanh(h2 @ params["w3"] + params["b3"]) * max_action


if __name__ == "__main__":
    state_dim, action_dim, max_action = 16, 4, 2.0
    batch = 2

    key = jax.random.PRNGKey(0)
    key, kx, kxb = jax.random.split(key, 3)
    x = jax.random.normal(kx, (batch, state_dim), jnp.float32)
    params = init_actor_params(key, state_dim, action_dim)
    ref = actor_reference(x, params, max_action)

    # 1) f32 weights: exact parity against the PyTorch-style reference.
    pp_f32, adim = pad_actor_params(params, weight_dtype=jnp.float32)
    out_f32 = jax.block_until_ready(actor_forward(x, pp_f32, adim, max_action))
    assert out_f32.shape == (batch, action_dim)
    assert jnp.allclose(out_f32, ref, atol=1e-5, rtol=1e-5), "f32 mismatch"

    # 2) Default bf16-weight path (production default): bf16 MXU feeds, f32
    #    accumulation/epilogue.  Looser tolerance from bf16 quantization.
    pp_bf16, adim = pad_actor_params(params)
    out_bf16 = jax.block_until_ready(actor_forward(x, pp_bf16, adim, max_action))
    assert out_bf16.shape == (batch, action_dim)
    assert jnp.allclose(out_bf16, ref, atol=5e-2, rtol=5e-2), "bf16 mismatch"

    # 3) Training-sized batch exercises the multi-step, TC-shardable batch grid.
    xb = jax.random.normal(kxb, (200, state_dim), jnp.float32)
    refb = actor_reference(xb, params, max_action)
    outb = jax.block_until_ready(actor_forward(xb, pp_bf16, adim, max_action))
    assert outb.shape == (200, action_dim)
    assert jnp.allclose(outb, refb, atol=5e-2, rtol=5e-2), "batched mismatch"

    print("KERNEL_OK")
</pallas_src>

<mosaic_0001>
module attributes {stable_mosaic.version = 11 : i64} {
  func.func @_actor_kernel(%arg0: i32, %arg1: memref<8x128xf32, #tpu.memory_space<vmem>>, %arg2: memref<128x512xf32, #tpu.memory_space<vmem>>, %arg3: memref<1x512xf32, #tpu.memory_space<vmem>>, %arg4: memref<512x384xf32, #tpu.memory_space<vmem>>, %arg5: memref<1x384xf32, #tpu.memory_space<vmem>>, %arg6: memref<384x128xf32, #tpu.memory_space<vmem>>, %arg7: memref<1x128xf32, #tpu.memory_space<vmem>>, %arg8: memref<8x128xf32, #tpu.memory_space<vmem>>) attributes {dimension_semantics = [#tpu.dimension_semantics<parallel>], iteration_bounds = array<i64: 1>, scalar_prefetch = 0 : i64, scratch_operands = 0 : i64, tpu.core_type = #tpu.core_type<tc>, window_params = [{transform_indices = @transform_0, window_bounds = array<i64: 8, 128>}, {pipeline_mode = #tpu.pipeline_mode<synchronous>, transform_indices = @transform_1, window_bounds = array<i64: 128, 512>}, {pipeline_mode = #tpu.pipeline_mode<synchronous>, transform_indices = @transform_2, window_bounds = array<i64: 1, 512>}, {pipeline_mode = #tpu.pipeline_mode<synchronous>, transform_indices = @transform_3, window_bounds = array<i64: 512, 384>}, {pipeline_mode = #tpu.pipeline_mode<synchronous>, transform_indices = @transform_4, window_bounds = array<i64: 1, 384>}, {pipeline_mode = #tpu.pipeline_mode<synchronous>, transform_indices = @transform_5, window_bounds = array<i64: 384, 128>}, {pipeline_mode = #tpu.pipeline_mode<synchronous>, transform_indices = @transform_6, window_bounds = array<i64: 1, 128>}, {transform_indices = @transform_7, window_bounds = array<i64: 8, 128>}]} {
    %c0 = arith.constant 0 : index
    %c0_0 = arith.constant 0 : index
    %0 = vector.load %arg1[%c0, %c0_0] : memref<8x128xf32, #tpu.memory_space<vmem>>, vector<8x128xf32>
    %c0_1 = arith.constant 0 : index
    %c0_2 = arith.constant 0 : index
    %1 = vector.load %arg2[%c0_1, %c0_2] : memref<128x512xf32, #tpu.memory_space<vmem>>, vector<128x512xf32>
    %cst = arith.constant dense<0.000000e+00> : vector<8x512xf32>
    %2 = tpu.matmul %0, %1, %cst {dimension_numbers = #tpu.dot_dimension_numbers<[1], [0], [0], [1], [0, 0, 1, 1], [], []>} : vector<8x128xf32>, vector<128x512xf32>, vector<8x512xf32> -> vector<8x512xf32>
    %c0_3 = arith.constant 0 : index
    %c0_4 = arith.constant 0 : index
    %3 = vector.load %arg3[%c0_3, %c0_4] : memref<1x512xf32, #tpu.memory_space<vmem>>, vector<1x512xf32>
    %4 = vector.broadcast %3 : vector<1x512xf32> to vector<8x512xf32>
    %5 = arith.addf %2, %4 : vector<8x512xf32>
    %cst_5 = arith.constant 0.000000e+00 : f32
    %6 = vector.broadcast %cst_5 : f32 to vector<8x512xf32>
    %7 = arith.maximumf %5, %6 : vector<8x512xf32>
    %c0_6 = arith.constant 0 : index
    %c0_7 = arith.constant 0 : index
    %8 = vector.load %arg4[%c0_6, %c0_7] : memref<512x384xf32, #tpu.memory_space<vmem>>, vector<512x384xf32>
    %cst_8 = arith.constant dense<0.000000e+00> : vector<8x384xf32>
    %9 = tpu.matmul %7, %8, %cst_8 {dimension_numbers = #tpu.dot_dimension_numbers<[1], [0], [0], [1], [0, 0, 1, 1], [], []>} : vector<8x512xf32>, vector<512x384xf32>, vector<8x384xf32> -> vector<8x384xf32>
    %c0_9 = arith.constant 0 : index
    %c0_10 = arith.constant 0 : index
    %10 = vector.load %arg5[%c0_9, %c0_10] : memref<1x384xf32, #tpu.memory_space<vmem>>, vector<1x384xf32>
    %11 = vector.broadcast %10 : vector<1x384xf32> to vector<8x384xf32>
    %12 = arith.addf %9, %11 : vector<8x384xf32>
    %cst_11 = arith.constant 0.000000e+00 : f32
    %13 = vector.broadcast %cst_11 : f32 to vector<8x384xf32>
    %14 = arith.maximumf %12, %13 : vector<8x384xf32>
    %c0_12 = arith.constant 0 : index
    %c0_13 = arith.constant 0 : index
    %15 = vector.load %arg6[%c0_12, %c0_13] : memref<384x128xf32, #tpu.memory_space<vmem>>, vector<384x128xf32>
    %cst_14 = arith.constant dense<0.000000e+00> : vector<8x128xf32>
    %16 = tpu.matmul %14, %15, %cst_14 {dimension_numbers = #tpu.dot_dimension_numbers<[1], [0], [0], [1], [0, 0, 1, 1], [], []>} : vector<8x384xf32>, vector<384x128xf32>, vector<8x128xf32> -> vector<8x128xf32>
    %c0_15 = arith.constant 0 : index
    %c0_16 = arith.constant 0 : index
    %17 = vector.load %arg7[%c0_15, %c0_16] : memref<1x128xf32, #tpu.memory_space<vmem>>, vector<1x128xf32>
    %18 = vector.broadcast %17 : vector<1x128xf32> to vector<8x128xf32>
    %19 = arith.addf %16, %18 : vector<8x128xf32>
    %20 = math.tanh %19 : vector<8x128xf32>
    %cst_17 = arith.constant 2.000000e+00 : f32
    %21 = vector.broadcast %cst_17 : f32 to vector<8x128xf32>
    %22 = arith.mulf %20, %21 : vector<8x128xf32>
    %c0_18 = arith.constant 0 : index
    %c0_19 = arith.constant 0 : index
    %23 = vector.load %arg8[%c0_18, %c0_19] : memref<8x128xf32, #tpu.memory_space<vmem>>, vector<8x128xf32>
    tpu.vector_store %arg8[%c0_18, %c0_19], %22 {strides = array<i32>} : memref<8x128xf32, #tpu.memory_space<vmem>>, vector<8x128xf32>,
    return
  }
  func.func @transform_0(%arg0: i32) -> (i32, i32) {
    %c0_i32 = arith.constant 0 : i32
    %c0_i32_0 = arith.constant 0 : i32
    return %arg0, %c0_i32 : i32, i32
  }
  func.func @transform_1(%arg0: i32) -> (i32, i32) {
    %c0_i32 = arith.constant 0 : i32
    %c0_i32_0 = arith.constant 0 : i32
    %c0_i32_1 = arith.constant 0 : i32
    return %c0_i32, %c0_i32_0 : i32, i32
  }
  func.func @transform_2(%arg0: i32) -> (i32, i32) {
    %c0_i32 = arith.constant 0 : i32
    %c0_i32_0 = arith.constant 0 : i32
    %c0_i32_1 = arith.constant 0 : i32
    return %c0_i32, %c0_i32_0 : i32, i32
  }
  func.func @transform_3(%arg0: i32) -> (i32, i32) {
    %c0_i32 = arith.constant 0 : i32
    %c0_i32_0 = arith.constant 0 : i32
    %c0_i32_1 = arith.constant 0 : i32
    return %c0_i32, %c0_i32_0 : i32, i32
  }
  func.func @transform_4(%arg0: i32) -> (i32, i32) {
    %c0_i32 = arith.constant 0 : i32
    %c0_i32_0 = arith.constant 0 : i32
    %c0_i32_1 = arith.constant 0 : i32
    return %c0_i32, %c0_i32_0 : i32, i32
  }
  func.func @transform_5(%arg0: i32) -> (i32, i32) {
    %c0_i32 = arith.constant 0 : i32
    %c0_i32_0 = arith.constant 0 : i32
    %c0_i32_1 = arith.constant 0 : i32
    return %c0_i32, %c0_i32_0 : i32, i32
  }
  func.func @transform_6(%arg0: i32) -> (i32, i32) {
    %c0_i32 = arith.constant 0 : i32
    %c0_i32_0 = arith.constant 0 : i32
    %c0_i32_1 = arith.constant 0 : i32
    return %c0_i32, %c0_i32_0 : i32, i32
  }
  func.func @transform_7(%arg0: i32) -> (i32, i32) {
    %c0_i32 = arith.constant 0 : i32
    %c0_i32_0 = arith.constant 0 : i32
    return %arg0, %c0_i32 : i32, i32
  }
}

module attributes {stable_mosaic.version = 11 : i64} {
  func.func @_actor_kernel(%arg0: i32, %arg1: memref<8x128xf32, #tpu.memory_space<vmem>>, %arg2: memref<128x512xf32, #tpu.memory_space<vmem>>, %arg3: memref<1x512xf32, #tpu.memory_space<vmem>>, %arg4: memref<512x384xf32, #tpu.memory_space<vmem>>, %arg5: memref<1x384xf32, #tpu.memory_space<vmem>>, %arg6: memref<384x128xf32, #tpu.memory_space<vmem>>, %arg7: memref<1x128xf32, #tpu.memory_space<vmem>>, %arg8: memref<8x128xf32, #tpu.memory_space<vmem>>) attributes {dimension_semantics = [#tpu.dimension_semantics<parallel>], iteration_bounds = array<i64: 1>, scalar_prefetch = 0 : i64, scratch_operands = 0 : i64, tpu.core_type = #tpu.core_type<tc>, window_params = [{transform_indices = @transform_0, window_bounds = array<i64: 8, 128>}, {pipeline_mode = #tpu.pipeline_mode<synchronous>, transform_indices = @transform_1, window_bounds = array<i64: 128, 512>}, {pipeline_mode = #tpu.pipeline_mode<synchronous>, transform_indices = @transform_2, window_bounds = array<i64: 1, 512>}, {pipeline_mode = #tpu.pipeline_mode<synchronous>, transform_indices = @transform_3, window_bounds = array<i64: 512, 384>}, {pipeline_mode = #tpu.pipeline_mode<synchronous>, transform_indices = @transform_4, window_bounds = array<i64: 1, 384>}, {pipeline_mode = #tpu.pipeline_mode<synchronous>, transform_indices = @transform_5, window_bounds = array<i64: 384, 128>}, {pipeline_mode = #tpu.pipeline_mode<synchronous>, transform_indices = @transform_6, window_bounds = array<i64: 1, 128>}, {transform_indices = @transform_7, window_bounds = array<i64: 8, 128>}]} {
    %c0 = arith.constant 0 : index
    %c0_0 = arith.constant 0 : index
    %0 = vector.load %arg1[%c0, %c0_0] : memref<8x128xf32, #tpu.memory_space<vmem>>, vector<8x128xf32>
    %c0_1 = arith.constant 0 : index
    %c0_2 = arith.constant 0 : index
    %1 = vector.load %arg2[%c0_1, %c0_2] : memref<128x512xf32, #tpu.memory_space<vmem>>, vector<128x512xf32>
    %cst = arith.constant dense<0.000000e+00> : vector<8x512xf32>
    %2 = tpu.matmul %0, %1, %cst {dimension_numbers = #tpu.dot_dimension_numbers<[1], [0], [0], [1], [0, 0, 1, 1], [], []>} : vector<8x128xf32>, vector<128x512xf32>, vector<8x512xf32> -> vector<8x512xf32>
    %c0_3 = arith.constant 0 : index
    %c0_4 = arith.constant 0 : index
    %3 = vector.load %arg3[%c0_3, %c0_4] : memref<1x512xf32, #tpu.memory_space<vmem>>, vector<1x512xf32>
    %4 = vector.broadcast %3 : vector<1x512xf32> to vector<8x512xf32>
    %5 = arith.addf %2, %4 : vector<8x512xf32>
    %cst_5 = arith.constant 0.000000e+00 : f32
    %6 = vector.broadcast %cst_5 : f32 to vector<8x512xf32>
    %7 = arith.maximumf %5, %6 : vector<8x512xf32>
    %c0_6 = arith.constant 0 : index
    %c0_7 = arith.constant 0 : index
    %8 = vector.load %arg4[%c0_6, %c0_7] : memref<512x384xf32, #tpu.memory_space<vmem>>, vector<512x384xf32>
    %cst_8 = arith.constant dense<0.000000e+00> : vector<8x384xf32>
    %9 = tpu.matmul %7, %8, %cst_8 {dimension_numbers = #tpu.dot_dimension_numbers<[1], [0], [0], [1], [0, 0, 1, 1], [], []>} : vector<8x512xf32>, vector<512x384xf32>, vector<8x384xf32> -> vector<8x384xf32>
    %c0_9 = arith.constant 0 : index
    %c0_10 = arith.constant 0 : index
    %10 = vector.load %arg5[%c0_9, %c0_10] : memref<1x384xf32, #tpu.memory_space<vmem>>, vector<1x384xf32>
    %11 = vector.broadcast %10 : vector<1x384xf32> to vector<8x384xf32>
    %12 = arith.addf %9, %11 : vector<8x384xf32>
    %cst_11 = arith.constant 0.000000e+00 : f32
    %13 = vector.broadcast %cst_11 : f32 to vector<8x384xf32>
    %14 = arith.maximumf %12, %13 : vector<8x384xf32>
    %c0_12 = arith.constant 0 : index
    %c0_13 = arith.constant 0 : index
    %15 = vector.load %arg6[%c0_12, %c0_13] : memref<384x128xf32, #tpu.memory_space<vmem>>, vector<384x128xf32>
    %cst_14 = arith.constant dense<0.000000e+00> : vector<8x128xf32>
    %16 = tpu.matmul %14, %15, %cst_14 {dimension_numbers = #tpu.dot_dimension_numbers<[1], [0], [0], [1], [0, 0, 1, 1], [], []>} : vector<8x384xf32>, vector<384x128xf32>, vector<8x128xf32> -> vector<8x128xf32>
    %c0_15 = arith.constant 0 : index
    %c0_16 = arith.constant 0 : index
    %17 = vector.load %arg7[%c0_15, %c0_16] : memref<1x128xf32, #tpu.memory_space<vmem>>, vector<1x128xf32>
    %18 = vector.broadcast %17 : vector<1x128xf32> to vector<8x128xf32>
    %19 = arith.addf %16, %18 : vector<8x128xf32>
    %20 = math.tanh %19 : vector<8x128xf32>
    %cst_17 = arith.constant 2.000000e+00 : f32
    %21 = vector.broadcast %cst_17 : f32 to vector<8x128xf32>
    %22 = arith.mulf %20, %21 : vector<8x128xf32>
    %c0_18 = arith.constant 0 : index
    %c0_19 = arith.constant 0 : index
    %23 = vector.load %arg8[%c0_18, %c0_19] : memref<8x128xf32, #tpu.memory_space<vmem>>, vector<8x128xf32>
    tpu.vector_store %arg8[%c0_18, %c0_19], %22 {strides = array<i32>} : memref<8x128xf32, #tpu.memory_space<vmem>>, vector<8x128xf32>,
    return
  }
  func.func @transform_0(%arg0: i32) -> (i32, i32) {
    %c0_i32 = arith.constant 0 : i32
    %c0_i32_0 = arith.constant 0 : i32
    return %arg0, %c0_i32 : i32, i32
  }
  func.func @transform_1(%arg0: i32) -> (i32, i32) {
    %c0_i32 = arith.constant 0 : i32
    %c0_i32_0 = arith.constant 0 : i32
    %c0_i32_1 = arith.constant 0 : i32
    return %c0_i32, %c0_i32_0 : i32, i32
  }
  func.func @transform_2(%arg0: i32) -> (i32, i32) {
    %c0_i32 = arith.constant 0 : i32
    %c0_i32_0 = arith.constant 0 : i32
    %c0_i32_1 = arith.constant 0 : i32
    return %c0_i32, %c0_i32_0 : i32, i32
  }
  func.func @transform_3(%arg0: i32) -> (i32, i32) {
    %c0_i32 = arith.constant 0 : i32
    %c0_i32_0 = arith.constant 0 : i32
    %c0_i32_1 = arith.constant 0 : i32
    return %c0_i32, %c0_i32_0 : i32, i32
  }
  func.func @transform_4(%arg0: i32) -> (i32, i32) {
    %c0_i32 = arith.constant 0 : i32
    %c0_i32_0 = arith.constant 0 : i32
    %c0_i32_1 = arith.constant 0 : i32
    return %c0_i32, %c0_i32_0 : i32, i32
  }
  func.func @transform_5(%arg0: i32) -> (i32, i32) {
    %c0_i32 = arith.constant 0 : i32
    %c0_i32_0 = arith.constant 0 : i32
    %c0_i32_1 = arith.constant 0 : i32
    return %c0_i32, %c0_i32_0 : i32, i32
  }
  func.func @transform_6(%arg0: i32) -> (i32, i32) {
    %c0_i32 = arith.constant 0 : i32
    %c0_i32_0 = arith.constant 0 : i32
    %c0_i32_1 = arith.constant 0 : i32
    return %c0_i32, %c0_i32_0 : i32, i32
  }
  func.func @transform_7(%arg0: i32) -> (i32, i32) {
    %c0_i32 = arith.constant 0 : i32
    %c0_i32_0 = arith.constant 0 : i32
    return %arg0, %c0_i32 : i32, i32
  }
}

</mosaic_0001>

<llo_original>
// kernel: tpu_custom_call.1
$region0: #{tpu_custom_call.1}
  #allocation0 [shape = 'u32[]', space=smem, size = 0x4, offset = 0x4, fixed_abs, tag = 'smem constant byte address 0x4 - core index']
  #allocation1 [shape = 'u32[144,128]{1,0:T(1,128)}', space=vmem, size = 0x12000, scoped, tag = 'internal scratch']
  %s0 = inlined_call_operand.hbm [shape: f32[8,128], index: 0, kind: input, shape index: {}]
  %s1 = inlined_call_operand.hbm [shape: f32[128,512], index: 1, kind: input, shape index: {}]
  %s2 = inlined_call_operand.hbm [shape: f32[1,512], index: 2, kind: input, shape index: {}]
  %s3 = inlined_call_operand.hbm [shape: f32[512,384], index: 3, kind: input, shape index: {}]
  %s4 = inlined_call_operand.vmem [shape: f32[1,384], index: 4, kind: input, shape index: {}]
  %s5 = inlined_call_operand.hbm [shape: f32[384,128], index: 5, kind: input, shape index: {}]
  %s6 = inlined_call_operand.vmem [shape: f32[1,128], index: 6, kind: input, shape index: {}]
  %s7 = inlined_call_operand.hbm [shape: f32[8,128], index: 7, kind: output, shape index: {}]
  %s8 = sld [smem:[#allocation0]]
  $region58: #{tpu_custom_call.1} parent=0
    _
  %s10 = ssub.s32 1, %s8
  %s11 = scalar_select 0, %s10, %s8
  $region1: #{tpu_custom_call.1} parent=0
    #allocation2 [shape = 'u8[4096]{0}', space=vmem, size = 0x1000, scoped, tag = 'input window, operand 0, single buffered']
    #allocation3 [shape = 's32[1]{0}', space=sflag, size = 0x4, scoped, tag = 'scoped memory for tpu_custom_call.1']
    #allocation4 [shape = 's32[1]{0}', space=sflag, size = 0x4, scoped, tag = 'scoped memory for tpu_custom_call.1']
    #allocation5 [shape = 'u8[262144]{0}', space=vmem, size = 0x40000, scoped, tag = 'input window, operand 1, single buffered']
    #allocation6 [shape = 's32[1]{0}', space=sflag, size = 0x4, scoped, tag = 'scoped memory for tpu_custom_call.1']
    #allocation7 [shape = 'u8[2048]{0}', space=vmem, size = 0x800, scoped, tag = 'input window, operand 2, single buffered']
    #allocation8 [shape = 'u8[786432]{0}', space=vmem, size = 0xc0000, scoped, tag = 'input window, operand 3, single buffered']
    #allocation9 [shape = 's32[1]{0}', space=sflag, size = 0x4, scoped, tag = 'scoped memory for tpu_custom_call.1']
    #allocation10 [shape = 'u8[196608]{0}', space=vmem, size = 0x30000, scoped, tag = 'input window, operand 5, single buffered']
    #allocation11 [shape = 'u8[4096]{0}', space=vmem, size = 0x1000, scoped, tag = 'output window, operand 0, single buffered']
    %12 = vsyncpa [#allocation3], 0
    %13 = vsyncpa [#allocation6], 0
    %14 = vsyncpa [#allocation9], 0
    %15 = vsyncpa [#allocation4], 0
    // Predicated region
    $region2: #{tpu_custom_call.1} parent=1 // pred_check
      _
    $region3: #{tpu_custom_call.1} parent=1 // pred_check_branch
      %17 = sbr.rel (0) target = $region5
    $region4: #{tpu_custom_call.1} parent=1 // pred_region
      %s19 = ssub.s32 128, 128
      %20 = vsyncadd [#allocation3], %s19
      %s22 = sshll.u32 [#allocation2], 4
      %s23 = int_to_ptr.vmem [resolvable:$true] %s22
      %25 = dma.hbm_to_vmem [thread:$0]  %s0, 128, %s23, [#allocation3]
    $region5: #{tpu_custom_call.1} parent=1 // pred_fallthru
      _
    // Predicated region
    $region6: #{tpu_custom_call.1} parent=1 // pred_check
      _
    $region7: #{tpu_custom_call.1} parent=1 // pred_check_branch
      %27 = sbr.rel (0) target = $region9
    $region8: #{tpu_custom_call.1} parent=1 // pred_region
      %s29 = ssub.s32 8192, 8192
      %30 = vsyncadd [#allocation6], %s29
      %s31 = sshll.u32 [#allocation5], 4
      %s32 = int_to_ptr.vmem [resolvable:$true] %s31
      %37 = dma.hbm_to_vmem [thread:$0]  %s1, 8192, %s32, [#allocation6], 512, 512, 32
    $region9: #{tpu_custom_call.1} parent=1 // pred_fallthru
      _
    // Predicated region
    $region10: #{tpu_custom_call.1} parent=1 // pred_check
      _
    $region11: #{tpu_custom_call.1} parent=1 // pred_check_branch
      %39 = sbr.rel (0) target = $region13
    $region12: #{tpu_custom_call.1} parent=1 // pred_region
      %s41 = ssub.s32 64, 64
      %42 = vsyncadd [#allocation6], %s41
      %s44 = sshll.u32 [#allocation7], 4
      %s45 = int_to_ptr.vmem [resolvable:$true] %s44
      %47 = dma.hbm_to_vmem [thread:$0]  %s2, 64, %s45, [#allocation6]
    $region13: #{tpu_custom_call.1} parent=1 // pred_fallthru
      _
    // Predicated region
    $region14: #{tpu_custom_call.1} parent=1 // pred_check
      _
    $region15: #{tpu_custom_call.1} parent=1 // pred_check_branch
      %49 = sbr.rel (0) target = $region17
    $region16: #{tpu_custom_call.1} parent=1 // pred_region
      %s51 = ssub.s32 24576, 24576
      %52 = vsyncadd [#allocation9], %s51
      %s53 = sshll.u32 [#allocation8], 4
      %s54 = int_to_ptr.vmem [resolvable:$true] %s53
      %59 = dma.hbm_to_vmem [thread:$0]  %s3, 24576, %s54, [#allocation9], 384, 384, 24
    $region17: #{tpu_custom_call.1} parent=1 // pred_fallthru
      _
    // Predicated region
    $region18: #{tpu_custom_call.1} parent=1 // pred_check
      _
    $region19: #{tpu_custom_call.1} parent=1 // pred_check_branch
      %61 = sbr.rel (0) target = $region21
    $region20: #{tpu_custom_call.1} parent=1 // pred_region
      _
    $region21: #{tpu_custom_call.1} parent=1 // pred_fallthru
      _
    // Predicated region
    $region22: #{tpu_custom_call.1} parent=1 // pred_check
      _
    $region23: #{tpu_custom_call.1} parent=1 // pred_check_branch
      %63 = sbr.rel (0) target = $region25
    $region24: #{tpu_custom_call.1} parent=1 // pred_region
      %s65 = ssub.s32 6144, 6144
      %66 = vsyncadd [#allocation9], %s65
      %s67 = sshll.u32 [#allocation10], 4
      %s68 = int_to_ptr.vmem [resolvable:$true] %s67
      %73 = dma.hbm_to_vmem [thread:$0]  %s5, 6144, %s68, [#allocation9], 128, 128, 8
    $region25: #{tpu_custom_call.1} parent=1 // pred_fallthru
      _
    // Predicated region
    $region26: #{tpu_custom_call.1} parent=1 // pred_check
      _
    $region27: #{tpu_custom_call.1} parent=1 // pred_check_branch
      %75 = sbr.rel (0) target = $region29
    $region28: #{tpu_custom_call.1} parent=1 // pred_region
      _
    $region29: #{tpu_custom_call.1} parent=1 // pred_fallthru
      _
    // Predicated region
    $region30: #{tpu_custom_call.1} parent=1 // pred_check
      _
    $region31: #{tpu_custom_call.1} parent=1 // pred_check_branch
      %77 = sbr.rel (0) target = $region33
    $region32: #{tpu_custom_call.1} parent=1 // pred_region
      %78 = dma.done [#allocation3], 128
    $region33: #{tpu_custom_call.1} parent=1 // pred_fallthru
      _
    // Predicated region
    $region34: #{tpu_custom_call.1} parent=1 // pred_check
      _
    $region35: #{tpu_custom_call.1} parent=1 // pred_check_branch
      %80 = sbr.rel (0) target = $region37
    $region36: #{tpu_custom_call.1} parent=1 // pred_region
      %81 = dma.done [#allocation6], 8192
    $region37: #{tpu_custom_call.1} parent=1 // pred_fallthru
      _
    // Predicated region
    $region38: #{tpu_custom_call.1} parent=1 // pred_check
      _
    $region39: #{tpu_custom_call.1} parent=1 // pred_check_branch
      %83 = sbr.rel (0) target = $region41
    $region40: #{tpu_custom_call.1} parent=1 // pred_region
      %84 = dma.done [#allocation6], 64
    $region41: #{tpu_custom_call.1} parent=1 // pred_fallthru
      _
    // Predicated region
    $region42: #{tpu_custom_call.1} parent=1 // pred_check
      _
    $region43: #{tpu_custom_call.1} parent=1 // pred_check_branch
      %86 = sbr.rel (0) target = $region45
    $region44: #{tpu_custom_call.1} parent=1 // pred_region
      %87 = dma.done [#allocation9], 24576
    $region45: #{tpu_custom_call.1} parent=1 // pred_fallthru
      _
    // Predicated region
    $region46: #{tpu_custom_call.1} parent=1 // pred_check
      _
    $region47: #{tpu_custom_call.1} parent=1 // pred_check_branch
      %89 = sbr.rel (0) target = $region49
    $region48: #{tpu_custom_call.1} parent=1 // pred_region
      %90 = dma.done [#allocation9], 6144
    $region49: #{tpu_custom_call.1} parent=1 // pred_fallthru
      _
    %v91 = vld [vmem:[#allocation2] sm:$0xff]
    %v92 = vld [vmem:[#allocation5] sm:$0xff]
    %v93 = vld [vmem:[#allocation5 + $0x8] sm:$0xff]
    %v94 = vld [vmem:[#allocation5 + $0x10] sm:$0xff]
    %v95 = vld [vmem:[#allocation5 + $0x18] sm:$0xff]
    %v96 = vld [vmem:[#allocation5 + $0x20] sm:$0xff]
    %v97 = vld [vmem:[#allocation5 + $0x28] sm:$0xff]
    %v98 = vld [vmem:[#allocation5 + $0x30] sm:$0xff]
    %v99 = vld [vmem:[#allocation5 + $0x38] sm:$0xff]
    %v100 = vld [vmem:[#allocation5 + $0x40] sm:$0xff]
    %v101 = vld [vmem:[#allocation5 + $0x48] sm:$0xff]
    %v102 = vld [vmem:[#allocation5 + $0x50] sm:$0xff]
    %v103 = vld [vmem:[#allocation5 + $0x58] sm:$0xff]
    %v104 = vld [vmem:[#allocation5 + $0x60] sm:$0xff]
    %v105 = vld [vmem:[#allocation5 + $0x68] sm:$0xff]
    %v106 = vld [vmem:[#allocation5 + $0x70] sm:$0xff]
    %v107 = vld [vmem:[#allocation5 + $0x78] sm:$0xff]
    %v108 = vld [vmem:[#allocation5 + $0x80] sm:$0xff]
    %v109 = vld [vmem:[#allocation5 + $0x88] sm:$0xff]
    %v110 = vld [vmem:[#allocation5 + $0x90] sm:$0xff]
    %v111 = vld [vmem:[#allocation5 + $0x98] sm:$0xff]
    %v112 = vld [vmem:[#allocation5 + $0xa0] sm:$0xff]
    %v113 = vld [vmem:[#allocation5 + $0xa8] sm:$0xff]
    %v114 = vld [vmem:[#allocation5 + $0xb0] sm:$0xff]
    %v115 = vld [vmem:[#allocation5 + $0xb8] sm:$0xff]
    %v116 = vld [vmem:[#allocation5 + $0xc0] sm:$0xff]
    %v117 = vld [vmem:[#allocation5 + $0xc8] sm:$0xff]
    %v118 = vld [vmem:[#allocation5 + $0xd0] sm:$0xff]
    %v119 = vld [vmem:[#allocation5 + $0xd8] sm:$0xff]
    %v120 = vld [vmem:[#allocation5 + $0xe0] sm:$0xff]
    %v121 = vld [vmem:[#allocation5 + $0xe8] sm:$0xff]
    %v122 = vld [vmem:[#allocation5 + $0xf0] sm:$0xff]
    %v123 = vld [vmem:[#allocation5 + $0xf8] sm:$0xff]
    %v124 = vld [vmem:[#allocation5 + $0x100] sm:$0xff]
    %v125 = vld [vmem:[#allocation5 + $0x108] sm:$0xff]
    %v126 = vld [vmem:[#allocation5 + $0x110] sm:$0xff]
    %v127 = vld [vmem:[#allocation5 + $0x118] sm:$0xff]
    %v128 = vld [vmem:[#allocation5 + $0x120] sm:$0xff]
    %v129 = vld [vmem:[#allocation5 + $0x128] sm:$0xff]
    %v130 = vld [vmem:[#allocation5 + $0x130] sm:$0xff]
    %v131 = vld [vmem:[#allocation5 + $0x138] sm:$0xff]
    %v132 = vld [vmem:[#allocation5 + $0x140] sm:$0xff]
    %v133 = vld [vmem:[#allocation5 + $0x148] sm:$0xff]
    %v134 = vld [vmem:[#allocation5 + $0x150] sm:$0xff]
    %v135 = vld [vmem:[#allocation5 + $0x158] sm:$0xff]
    %v136 = vld [vmem:[#allocation5 + $0x160] sm:$0xff]
    %v137 = vld [vmem:[#allocation5 + $0x168] sm:$0xff]
    %v138 = vld [vmem:[#allocation5 + $0x170] sm:$0xff]
    %v139 = vld [vmem:[#allocation5 + $0x178] sm:$0xff]
    %v140 = vld [vmem:[#allocation5 + $0x180] sm:$0xff]
    %v141 = vld [vmem:[#allocation5 + $0x188] sm:$0xff]
    %v142 = vld [vmem:[#allocation5 + $0x190] sm:$0xff]
    %v143 = vld [vmem:[#allocation5 + $0x198] sm:$0xff]
    %v144 = vld [vmem:[#allocation5 + $0x1a0] sm:$0xff]
    %v145 = vld [vmem:[#allocation5 + $0x1a8] sm:$0xff]
    %v146 = vld [vmem:[#allocation5 + $0x1b0] sm:$0xff]
    %v147 = vld [vmem:[#allocation5 + $0x1b8] sm:$0xff]
    %v148 = vld [vmem:[#allocation5 + $0x1c0] sm:$0xff]
    %v149 = vld [vmem:[#allocation5 + $0x1c8] sm:$0xff]
    %v150 = vld [vmem:[#allocation5 + $0x1d0] sm:$0xff]
    %v151 = vld [vmem:[#allocation5 + $0x1d8] sm:$0xff]
    %v152 = vld [vmem:[#allocation5 + $0x1e0] sm:$0xff]
    %v153 = vld [vmem:[#allocation5 + $0x1e8] sm:$0xff]
    %v154 = vld [vmem:[#allocation5 + $0x1f0] sm:$0xff]
    %v155 = vld [vmem:[#allocation5 + $0x1f8] sm:$0xff]
    %v156 = vld [vmem:[#allocation7] sm:$0xf]
    %v158 = vlaneseq
    %v159 = vshrl.u32 %v158, 7
    %v160 = vsub.s32 0, %v159
    %v161 = vrot.slane %v156, %v160
    %v162 = vlaneseq
    %v163 = vshrl.u32 %v162, 7
    %v164 = vsub.s32 1, %v163
    %v165 = vrot.slane %v156, %v164
    %v166 = vlaneseq
    %v167 = vshrl.u32 %v166, 7
    %v168 = vsub.s32 2, %v167
    %v169 = vrot.slane %v156, %v168
    %v170 = vlaneseq
    %v171 = vshrl.u32 %v170, 7
    %v172 = vsub.s32 3, %v171
    %v173 = vrot.slane %v156, %v172
    %178 = vmatprep.subr.mxu0 %v153
    %179 = vmatpush1.msra.mxu0 %v152
    %180 = vmatprep.subr.mxu0 %v149
    %181 = vmatpush1.msra.mxu0 %v148
    %182 = vmatprep.subr.mxu0 %v145
    %183 = vmatpush1.msra.mxu0 %v144
    %184 = vmatprep.subr.mxu0 %v141
    %185 = vmatpush1.msra.mxu0 %v140
    %186 = vmatprep.subr.mxu0 %v137
    %187 = vmatpush1.msra.mxu0 %v136
    %188 = vmatprep.subr.mxu0 %v133
    %189 = vmatpush1.msra.mxu0 %v132
    %190 = vmatprep.subr.mxu0 %v129
    %191 = vmatpush1.msra.mxu0 %v128
    %192 = vmatprep.subr.mxu0 %v125
    %193 = vmatpush1.msra.mxu0 %v124
    %194 = vmatprep.subr.mxu0 %v121
    %195 = vmatpush1.msra.mxu0 %v120
    %196 = vmatprep.subr.mxu0 %v117
    %197 = vmatpush1.msra.mxu0 %v116
    %198 = vmatprep.subr.mxu0 %v113
    %199 = vmatpush1.msra.mxu0 %v112
    %200 = vmatprep.subr.mxu0 %v109
    %201 = vmatpush1.msra.mxu0 %v108
    %202 = vmatprep.subr.mxu0 %v105
    %203 = vmatpush1.msra.mxu0 %v104
    %204 = vmatprep.subr.mxu0 %v101
    %205 = vmatpush1.msra.mxu0 %v100
    %206 = vmatprep.subr.mxu0 %v97
    %207 = vmatpush1.msra.mxu0 %v96
    %208 = vmatprep.subr.mxu0 %v93
    %209 = vmatpush1.msra.mxu0 %v92
    %210 = vmatprep.subr.mxu0 0.0
    %211 = vmatpush2.msra.mxu0 0.0
    %212 = vmatprep.subr.mxu0 0.0
    %213 = vmatpush2.msra.mxu0 0.0
    %214 = vmatprep.subr.mxu0 0.0
    %215 = vmatpush2.msra.mxu0 0.0
    %216 = vmatprep.subr.mxu0 0.0
    %217 = vmatpush2.msra.mxu0 0.0
    %218 = vmatprep.subr.mxu0 0.0
    %219 = vmatpush2.msra.mxu0 0.0
    %220 = vmatprep.subr.mxu0 0.0
    %221 = vmatpush2.msra.mxu0 0.0
    %222 = vmatprep.subr.mxu0 0.0
    %223 = vmatpush2.msra.mxu0 0.0
    %224 = vmatprep.subr.mxu0 0.0
    %225 = vmatpush2.msra.mxu0 0.0
    %226 = vmatprep.subr.mxu0 0.0
    %227 = vmatpush2.msra.mxu0 0.0
    %228 = vmatprep.subr.mxu0 0.0
    %229 = vmatpush2.msra.mxu0 0.0
    %230 = vmatprep.subr.mxu0 0.0
    %231 = vmatpush2.msra.mxu0 0.0
    %232 = vmatprep.subr.mxu0 0.0
    %233 = vmatpush2.msra.mxu0 0.0
    %234 = vmatprep.subr.mxu0 0.0
    %235 = vmatpush2.msra.mxu0 0.0
    %236 = vmatprep.subr.mxu0 0.0
    %237 = vmatpush2.msra.mxu0 0.0
    %238 = vmatprep.subr.mxu0 0.0
    %239 = vmatpush2.msra.mxu0 0.0
    %240 = vmatprep.subr.mxu0 0.0
    %241 = vmatpush2.msra.mxu0 0.0
    %242 = vmatprep.mubr.f32.mxu0 0.0
    %243 = vmatmul.mubr.f32.gmra.mxu0 %v91
    %v244 = vpop.f32.mrf.mxu0
    %v245 = vadd.f32 %v161, %v244
    %v246 = vpop.f32.mrf.mxu0
    %v247 = vadd.f32 %v165, %v246
    %248 = vdwg.mxu0
    %249 = vmatprep.subr.mxu0 %v155
    %250 = vmatpush1.msra.mxu0 %v154
    %251 = vmatprep.subr.mxu0 %v151
    %252 = vmatpush1.msra.mxu0 %v150
    %253 = vmatprep.subr.mxu0 %v147
    %254 = vmatpush1.msra.mxu0 %v146
    %255 = vmatprep.subr.mxu0 %v143
    %256 = vmatpush1.msra.mxu0 %v142
    %257 = vmatprep.subr.mxu0 %v139
    %258 = vmatpush1.msra.mxu0 %v138
    %259 = vmatprep.subr.mxu0 %v135
    %260 = vmatpush1.msra.mxu0 %v134
    %261 = vmatprep.subr.mxu0 %v131
    %262 = vmatpush1.msra.mxu0 %v130
    %263 = vmatprep.subr.mxu0 %v127
    %264 = vmatpush1.msra.mxu0 %v126
    %265 = vmatprep.subr.mxu0 %v123
    %266 = vmatpush1.msra.mxu0 %v122
    %267 = vmatprep.subr.mxu0 %v119
    %268 = vmatpush1.msra.mxu0 %v118
    %269 = vmatprep.subr.mxu0 %v115
    %270 = vmatpush1.msra.mxu0 %v114
    %271 = vmatprep.subr.mxu0 %v111
    %272 = vmatpush1.msra.mxu0 %v110
    %273 = vmatprep.subr.mxu0 %v107
    %274 = vmatpush1.msra.mxu0 %v106
    %275 = vmatprep.subr.mxu0 %v103
    %276 = vmatpush1.msra.mxu0 %v102
    %277 = vmatprep.subr.mxu0 %v99
    %278 = vmatpush1.msra.mxu0 %v98
    %279 = vmatprep.subr.mxu0 %v95
    %280 = vmatpush1.msra.mxu0 %v94
    %281 = vmatprep.subr.mxu0 0.0
    %282 = vmatpush2.msra.mxu0 0.0
    %283 = vmatprep.subr.mxu0 0.0
    %284 = vmatpush2.msra.mxu0 0.0
    %285 = vmatprep.subr.mxu0 0.0
    %286 = vmatpush2.msra.mxu0 0.0
    %287 = vmatprep.subr.mxu0 0.0
    %288 = vmatpush2.msra.mxu0 0.0
    %289 = vmatprep.subr.mxu0 0.0
    %290 = vmatpush2.msra.mxu0 0.0
    %291 = vmatprep.subr.mxu0 0.0
    %292 = vmatpush2.msra.mxu0 0.0
    %293 = vmatprep.subr.mxu0 0.0
    %294 = vmatpush2.msra.mxu0 0.0
    %295 = vmatprep.subr.mxu0 0.0
    %296 = vmatpush2.msra.mxu0 0.0
    %297 = vmatprep.subr.mxu0 0.0
    %298 = vmatpush2.msra.mxu0 0.0
    %299 = vmatprep.subr.mxu0 0.0
    %300 = vmatpush2.msra.mxu0 0.0
    %301 = vmatprep.subr.mxu0 0.0
    %302 = vmatpush2.msra.mxu0 0.0
    %303 = vmatprep.subr.mxu0 0.0
    %304 = vmatpush2.msra.mxu0 0.0
    %305 = vmatprep.subr.mxu0 0.0
    %306 = vmatpush2.msra.mxu0 0.0
    %307 = vmatprep.subr.mxu0 0.0
    %308 = vmatpush2.msra.mxu0 0.0
    %309 = vmatprep.subr.mxu0 0.0
    %310 = vmatpush2.msra.mxu0 0.0
    %311 = vmatprep.subr.mxu0 0.0
    %312 = vmatpush2.msra.mxu0 0.0
    %313 = vmatprep.mubr.f32.mxu0 0.0
    %314 = vmatmul.mubr.f32.gmra.mxu0 %v91
    %v315 = vpop.f32.mrf.mxu0
    %v316 = vadd.f32 %v169, %v315
    %v317 = vpop.f32.mrf.mxu0
    %v318 = vadd.f32 %v173, %v317
    %319 = vdwg.mxu0
    %v320 = vmax.f32 %v245, 0.0
    %v321 = vmax.f32 %v247, 0.0
    %v322 = vmax.f32 %v316, 0.0
    %v323 = vmax.f32 %v318, 0.0
    %v324 = vld [vmem:[#allocation8] sm:$0xff]
    %v325 = vld [vmem:[#allocation8 + $0x8] sm:$0xff]
    %v326 = vld [vmem:[#allocation8 + $0x10] sm:$0xff]
    %v327 = vld [vmem:[#allocation8 + $0x18] sm:$0xff]
    %v328 = vld [vmem:[#allocation8 + $0x20] sm:$0xff]
    %v329 = vld [vmem:[#allocation8 + $0x28] sm:$0xff]
    %v330 = vld [vmem:[#allocation8 + $0x30] sm:$0xff]
    %v331 = vld [vmem:[#allocation8 + $0x38] sm:$0xff]
    %v332 = vld [vmem:[#allocation8 + $0x40] sm:$0xff]
    %v333 = vld [vmem:[#allocation8 + $0x48] sm:$0xff]
    %v334 = vld [vmem:[#allocation8 + $0x50] sm:$0xff]
    %v335 = vld [vmem:[#allocation8 + $0x58] sm:$0xff]
    %v336 = vld [vmem:[#allocation8 + $0x60] sm:$0xff]
    %v337 = vld [vmem:[#allocation8 + $0x68] sm:$0xff]
    %v338 = vld [vmem:[#allocation8 + $0x70] sm:$0xff]
    %v339 = vld [vmem:[#allocation8 + $0x78] sm:$0xff]
    %v340 = vld [vmem:[#allocation8 + $0x80] sm:$0xff]
    %v341 = vld [vmem:[#allocation8 + $0x88] sm:$0xff]
    %v342 = vld [vmem:[#allocation8 + $0x90] sm:$0xff]
    %v343 = vld [vmem:[#allocation8 + $0x98] sm:$0xff]
    %v344 = vld [vmem:[#allocation8 + $0xa0] sm:$0xff]
    %v345 = vld [vmem:[#allocation8 + $0xa8] sm:$0xff]
    %v346 = vld [vmem:[#allocation8 + $0xb0] sm:$0xff]
    %v347 = vld [vmem:[#allocation8 + $0xb8] sm:$0xff]
    %v348 = vld [vmem:[#allocation8 + $0xc0] sm:$0xff]
    %v349 = vld [vmem:[#allocation8 + $0xc8] sm:$0xff]
    %v350 = vld [vmem:[#allocation8 + $0xd0] sm:$0xff]
    %v351 = vld [vmem:[#allocation8 + $0xd8] sm:$0xff]
    %v352 = vld [vmem:[#allocation8 + $0xe0] sm:$0xff]
    %v353 = vld [vmem:[#allocation8 + $0xe8] sm:$0xff]
    %v354 = vld [vmem:[#allocation8 + $0xf0] sm:$0xff]
    %v355 = vld [vmem:[#allocation8 + $0xf8] sm:$0xff]
    %v356 = vld [vmem:[#allocation8 + $0x100] sm:$0xff]
    %v357 = vld [vmem:[#allocation8 + $0x108] sm:$0xff]
    %v358 = vld [vmem:[#allocation8 + $0x110] sm:$0xff]
    %v359 = vld [vmem:[#allocation8 + $0x118] sm:$0xff]
    %v360 = vld [vmem:[#allocation8 + $0x120] sm:$0xff]
    %v361 = vld [vmem:[#allocation8 + $0x128] sm:$0xff]
    %v362 = vld [vmem:[#allocation8 + $0x130] sm:$0xff]
    %v363 = vld [vmem:[#allocation8 + $0x138] sm:$0xff]
    %v364 = vld [vmem:[#allocation8 + $0x140] sm:$0xff]
    %v365 = vld [vmem:[#allocation8 + $0x148] sm:$0xff]
    %v366 = vld [vmem:[#allocation8 + $0x150] sm:$0xff]
    %v367 = vld [vmem:[#allocation8 + $0x158] sm:$0xff]
    %v368 = vld [vmem:[#allocation8 + $0x160] sm:$0xff]
    %v369 = vld [vmem:[#allocation8 + $0x168] sm:$0xff]
    %v370 = vld [vmem:[#allocation8 + $0x170] sm:$0xff]
    %v371 = vld [vmem:[#allocation8 + $0x178] sm:$0xff]
    %v372 = vld [vmem:[#allocation8 + $0x180] sm:$0xff]
    %v373 = vld [vmem:[#allocation8 + $0x188] sm:$0xff]
    %v374 = vld [vmem:[#allocation8 + $0x190] sm:$0xff]
    %v375 = vld [vmem:[#allocation8 + $0x198] sm:$0xff]
    %v376 = vld [vmem:[#allocation8 + $0x1a0] sm:$0xff]
    %v377 = vld [vmem:[#allocation8 + $0x1a8] sm:$0xff]
    %v378 = vld [vmem:[#allocation8 + $0x1b0] sm:$0xff]
    %v379 = vld [vmem:[#allocation8 + $0x1b8] sm:$0xff]
    %v380 = vld [vmem:[#allocation8 + $0x1c0] sm:$0xff]
    %v381 = vld [vmem:[#allocation8 + $0x1c8] sm:$0xff]
    %v382 = vld [vmem:[#allocation8 + $0x1d0] sm:$0xff]
    %v383 = vld [vmem:[#allocation8 + $0x1d8] sm:$0xff]
    %v384 = vld [vmem:[#allocation8 + $0x1e0] sm:$0xff]
    %v385 = vld [vmem:[#allocation8 + $0x1e8] sm:$0xff]
    %v386 = vld [vmem:[#allocation8 + $0x1f0] sm:$0xff]
    %v387 = vld [vmem:[#allocation8 + $0x1f8] sm:$0xff]
    %v388 = vld [vmem:[#allocation8 + $0x200] sm:$0xff]
    %v389 = vld [vmem:[#allocation8 + $0x208] sm:$0xff]
    %v390 = vld [vmem:[#allocation8 + $0x210] sm:$0xff]
    %v391 = vld [vmem:[#allocation8 + $0x218] sm:$0xff]
    %v392 = vld [vmem:[#allocation8 + $0x220] sm:$0xff]
    %v393 = vld [vmem:[#allocation8 + $0x228] sm:$0xff]
    %v394 = vld [vmem:[#allocation8 + $0x230] sm:$0xff]
    %v395 = vld [vmem:[#allocation8 + $0x238] sm:$0xff]
    %v396 = vld [vmem:[#allocation8 + $0x240] sm:$0xff]
    %v397 = vld [vmem:[#allocation8 + $0x248] sm:$0xff]
    %v398 = vld [vmem:[#allocation8 + $0x250] sm:$0xff]
    %v399 = vld [vmem:[#allocation8 + $0x258] sm:$0xff]
    %v400 = vld [vmem:[#allocation8 + $0x260] sm:$0xff]
    %v401 = vld [vmem:[#allocation8 + $0x268] sm:$0xff]
    %v402 = vld [vmem:[#allocation8 + $0x270] sm:$0xff]
    %v403 = vld [vmem:[#allocation8 + $0x278] sm:$0xff]
    %v404 = vld [vmem:[#allocation8 + $0x280] sm:$0xff]
    %v405 = vld [vmem:[#allocation8 + $0x288] sm:$0xff]
    %v406 = vld [vmem:[#allocation8 + $0x290] sm:$0xff]
    %v407 = vld [vmem:[#allocation8 + $0x298] sm:$0xff]
    %v408 = vld [vmem:[#allocation8 + $0x2a0] sm:$0xff]
    %v409 = vld [vmem:[#allocation8 + $0x2a8] sm:$0xff]
    %v410 = vld [vmem:[#allocation8 + $0x2b0] sm:$0xff]
    %v411 = vld [vmem:[#allocation8 + $0x2b8] sm:$0xff]
    %v412 = vld [vmem:[#allocation8 + $0x2c0] sm:$0xff]
    %v413 = vld [vmem:[#allocation8 + $0x2c8] sm:$0xff]
    %v414 = vld [vmem:[#allocation8 + $0x2d0] sm:$0xff]
    %v415 = vld [vmem:[#allocation8 + $0x2d8] sm:$0xff]
    %v416 = vld [vmem:[#allocation8 + $0x2e0] sm:$0xff]
    %v417 = vld [vmem:[#allocation8 + $0x2e8] sm:$0xff]
    %v418 = vld [vmem:[#allocation8 + $0x2f0] sm:$0xff]
    %v419 = vld [vmem:[#allocation8 + $0x2f8] sm:$0xff]
    %v420 = vld [vmem:[#allocation8 + $0x300] sm:$0xff]
    %v421 = vld [vmem:[#allocation8 + $0x308] sm:$0xff]
    %v422 = vld [vmem:[#allocation8 + $0x310] sm:$0xff]
    %v423 = vld [vmem:[#allocation8 + $0x318] sm:$0xff]
    %v424 = vld [vmem:[#allocation8 + $0x320] sm:$0xff]
    %v425 = vld [vmem:[#allocation8 + $0x328] sm:$0xff]
    %v426 = vld [vmem:[#allocation8 + $0x330] sm:$0xff]
    %v427 = vld [vmem:[#allocation8 + $0x338] sm:$0xff]
    %v428 = vld [vmem:[#allocation8 + $0x340] sm:$0xff]
    %v429 = vld [vmem:[#allocation8 + $0x348] sm:$0xff]
    %v430 = vld [vmem:[#allocation8 + $0x350] sm:$0xff]
    %v431 = vld [vmem:[#allocation8 + $0x358] sm:$0xff]
    %v432 = vld [vmem:[#allocation8 + $0x360] sm:$0xff]
    %v433 = vld [vmem:[#allocation8 + $0x368] sm:$0xff]
    %v434 = vld [vmem:[#allocation8 + $0x370] sm:$0xff]
    %v435 = vld [vmem:[#allocation8 + $0x378] sm:$0xff]
    %v436 = vld [vmem:[#allocation8 + $0x380] sm:$0xff]
    %v437 = vld [vmem:[#allocation8 + $0x388] sm:$0xff]
    %v438 = vld [vmem:[#allocation8 + $0x390] sm:$0xff]
    %v439 = vld [vmem:[#allocation8 + $0x398] sm:$0xff]
    %v440 = vld [vmem:[#allocation8 + $0x3a0] sm:$0xff]
    %v441 = vld [vmem:[#allocation8 + $0x3a8] sm:$0xff]
    %v442 = vld [vmem:[#allocation8 + $0x3b0] sm:$0xff]
    %v443 = vld [vmem:[#allocation8 + $0x3b8] sm:$0xff]
    %v444 = vld [vmem:[#allocation8 + $0x3c0] sm:$0xff]
    %v445 = vld [vmem:[#allocation8 + $0x3c8] sm:$0xff]
    %v446 = vld [vmem:[#allocation8 + $0x3d0] sm:$0xff]
    %v447 = vld [vmem:[#allocation8 + $0x3d8] sm:$0xff]
    %v448 = vld [vmem:[#allocation8 + $0x3e0] sm:$0xff]
    %v449 = vld [vmem:[#allocation8 + $0x3e8] sm:$0xff]
    %v450 = vld [vmem:[#allocation8 + $0x3f0] sm:$0xff]
    %v451 = vld [vmem:[#allocation8 + $0x3f8] sm:$0xff]
    %v452 = vld [vmem:[#allocation8 + $0x400] sm:$0xff]
    %v453 = vld [vmem:[#allocation8 + $0x408] sm:$0xff]
    %v454 = vld [vmem:[#allocation8 + $0x410] sm:$0xff]
    %v455 = vld [vmem:[#allocation8 + $0x418] sm:$0xff]
    %v456 = vld [vmem:[#allocation8 + $0x420] sm:$0xff]
    %v457 = vld [vmem:[#allocation8 + $0x428] sm:$0xff]
    %v458 = vld [vmem:[#allocation8 + $0x430] sm:$0xff]
    %v459 = vld [vmem:[#allocation8 + $0x438] sm:$0xff]
    %v460 = vld [vmem:[#allocation8 + $0x440] sm:$0xff]
    %v461 = vld [vmem:[#allocation8 + $0x448] sm:$0xff]
    %v462 = vld [vmem:[#allocation8 + $0x450] sm:$0xff]
    %v463 = vld [vmem:[#allocation8 + $0x458] sm:$0xff]
    %v464 = vld [vmem:[#allocation8 + $0x460] sm:$0xff]
    %v465 = vld [vmem:[#allocation8 + $0x468] sm:$0xff]
    %v466 = vld [vmem:[#allocation8 + $0x470] sm:$0xff]
    %v467 = vld [vmem:[#allocation8 + $0x478] sm:$0xff]
    %v468 = vld [vmem:[#allocation8 + $0x480] sm:$0xff]
    %v469 = vld [vmem:[#allocation8 + $0x488] sm:$0xff]
    %v470 = vld [vmem:[#allocation8 + $0x490] sm:$0xff]
    %v471 = vld [vmem:[#allocation8 + $0x498] sm:$0xff]
    %v472 = vld [vmem:[#allocation8 + $0x4a0] sm:$0xff]
    %v473 = vld [vmem:[#allocation8 + $0x4a8] sm:$0xff]
    %v474 = vld [vmem:[#allocation8 + $0x4b0] sm:$0xff]
    %v475 = vld [vmem:[#allocation8 + $0x4b8] sm:$0xff]
    %v476 = vld [vmem:[#allocation8 + $0x4c0] sm:$0xff]
    %v477 = vld [vmem:[#allocation8 + $0x4c8] sm:$0xff]
    %v478 = vld [vmem:[#allocation8 + $0x4d0] sm:$0xff]
    %v479 = vld [vmem:[#allocation8 + $0x4d8] sm:$0xff]
    %v480 = vld [vmem:[#allocation8 + $0x4e0] sm:$0xff]
    %v481 = vld [vmem:[#allocation8 + $0x4e8] sm:$0xff]
    %v482 = vld [vmem:[#allocation8 + $0x4f0] sm:$0xff]
    %v483 = vld [vmem:[#allocation8 + $0x4f8] sm:$0xff]
    %v484 = vld [vmem:[#allocation8 + $0x500] sm:$0xff]
    %v485 = vld [vmem:[#allocation8 + $0x508] sm:$0xff]
    %v486 = vld [vmem:[#allocation8 + $0x510] sm:$0xff]
    %v487 = vld [vmem:[#allocation8 + $0x518] sm:$0xff]
    %v488 = vld [vmem:[#allocation8 + $0x520] sm:$0xff]
    %v489 = vld [vmem:[#allocation8 + $0x528] sm:$0xff]
    %v490 = vld [vmem:[#allocation8 + $0x530] sm:$0xff]
    %v491 = vld [vmem:[#allocation8 + $0x538] sm:$0xff]
    %v492 = vld [vmem:[#allocation8 + $0x540] sm:$0xff]
    %v493 = vld [vmem:[#allocation8 + $0x548] sm:$0xff]
    %v494 = vld [vmem:[#allocation8 + $0x550] sm:$0xff]
    %v495 = vld [vmem:[#allocation8 + $0x558] sm:$0xff]
    %v496 = vld [vmem:[#allocation8 + $0x560] sm:$0xff]
    %v497 = vld [vmem:[#allocation8 + $0x568] sm:$0xff]
    %v498 = vld [vmem:[#allocation8 + $0x570] sm:$0xff]
    %v499 = vld [vmem:[#allocation8 + $0x578] sm:$0xff]
    %v500 = vld [vmem:[#allocation8 + $0x580] sm:$0xff]
    %v501 = vld [vmem:[#allocation8 + $0x588] sm:$0xff]
    %v502 = vld [vmem:[#allocation8 + $0x590] sm:$0xff]
    %v503 = vld [vmem:[#allocation8 + $0x598] sm:$0xff]
    %v504 = vld [vmem:[#allocation8 + $0x5a0] sm:$0xff]
    %v505 = vld [vmem:[#allocation8 + $0x5a8] sm:$0xff]
    %v506 = vld [vmem:[#allocation8 + $0x5b0] sm:$0xff]
    %v507 = vld [vmem:[#allocation8 + $0x5b8] sm:$0xff]
    %v508 = vld [vmem:[#allocation8 + $0x5c0] sm:$0xff]
    %v509 = vld [vmem:[#allocation8 + $0x5c8] sm:$0xff]
    %v510 = vld [vmem:[#allocation8 + $0x5d0] sm:$0xff]
    %v511 = vld [vmem:[#allocation8 + $0x5d8] sm:$0xff]
    %v512 = vld [vmem:[#allocation8 + $0x5e0] sm:$0xff]
    %v513 = vld [vmem:[#allocation8 + $0x5e8] sm:$0xff]
    %v514 = vld [vmem:[#allocation8 + $0x5f0] sm:$0xff]
    %v515 = vld [vmem:[#allocation8 + $0x5f8] sm:$0xff]
    %v516 = vld [vmem:[%s4] sm:$0x7]
    %v518 = vlaneseq
    %v519 = vshrl.u32 %v518, 7
    %v520 = vsub.s32 0, %v519
    %v521 = vrot.slane %v516, %v520
    %v522 = vlaneseq
    %v523 = vshrl.u32 %v522, 7
    %v524 = vsub.s32 1, %v523
    %v525 = vrot.slane %v516, %v524
    %v526 = vlaneseq
    %v527 = vshrl.u32 %v526, 7
    %v528 = vsub.s32 2, %v527
    %v529 = vrot.slane %v516, %v528
    %533 = vmatprep.subr.mxu0 %v370
    %534 = vmatpush1.msra.mxu0 %v369
    %535 = vmatprep.subr.mxu0 %v367
    %536 = vmatpush1.msra.mxu0 %v366
    %537 = vmatprep.subr.mxu0 %v364
    %538 = vmatpush1.msra.mxu0 %v363
    %539 = vmatprep.subr.mxu0 %v361
    %540 = vmatpush1.msra.mxu0 %v360
    %541 = vmatprep.subr.mxu0 %v358
    %542 = vmatpush1.msra.mxu0 %v357
    %543 = vmatprep.subr.mxu0 %v355
    %544 = vmatpush1.msra.mxu0 %v354
    %545 = vmatprep.subr.mxu0 %v352
    %546 = vmatpush1.msra.mxu0 %v351
    %547 = vmatprep.subr.mxu0 %v349
    %548 = vmatpush1.msra.mxu0 %v348
    %549 = vmatprep.subr.mxu0 %v346
    %550 = vmatpush1.msra.mxu0 %v345
    %551 = vmatprep.subr.mxu0 %v343
    %552 = vmatpush1.msra.mxu0 %v342
    %553 = vmatprep.subr.mxu0 %v340
    %554 = vmatpush1.msra.mxu0 %v339
    %555 = vmatprep.subr.mxu0 %v337
    %556 = vmatpush1.msra.mxu0 %v336
    %557 = vmatprep.subr.mxu0 %v334
    %558 = vmatpush1.msra.mxu0 %v333
    %559 = vmatprep.subr.mxu0 %v331
    %560 = vmatpush1.msra.mxu0 %v330
    %561 = vmatprep.subr.mxu0 %v328
    %562 = vmatpush1.msra.mxu0 %v327
    %563 = vmatprep.subr.mxu0 %v325
    %564 = vmatpush1.msra.mxu0 %v324
    %565 = vmatprep.subr.mxu0 %v418
    %566 = vmatpush2.msra.mxu0 %v417
    %567 = vmatprep.subr.mxu0 %v415
    %568 = vmatpush2.msra.mxu0 %v414
    %569 = vmatprep.subr.mxu0 %v412
    %570 = vmatpush2.msra.mxu0 %v411
    %571 = vmatprep.subr.mxu0 %v409
    %572 = vmatpush2.msra.mxu0 %v408
    %573 = vmatprep.subr.mxu0 %v406
    %574 = vmatpush2.msra.mxu0 %v405
    %575 = vmatprep.subr.mxu0 %v403
    %576 = vmatpush2.msra.mxu0 %v402
    %577 = vmatprep.subr.mxu0 %v400
    %578 = vmatpush2.msra.mxu0 %v399
    %579 = vmatprep.subr.mxu0 %v397
    %580 = vmatpush2.msra.mxu0 %v396
    %581 = vmatprep.subr.mxu0 %v394
    %582 = vmatpush2.msra.mxu0 %v393
    %583 = vmatprep.subr.mxu0 %v391
    %584 = vmatpush2.msra.mxu0 %v390
    %585 = vmatprep.subr.mxu0 %v388
    %586 = vmatpush2.msra.mxu0 %v387
    %587 = vmatprep.subr.mxu0 %v385
    %588 = vmatpush2.msra.mxu0 %v384
    %589 = vmatprep.subr.mxu0 %v382
    %590 = vmatpush2.msra.mxu0 %v381
    %591 = vmatprep.subr.mxu0 %v379
    %592 = vmatpush2.msra.mxu0 %v378
    %593 = vmatprep.subr.mxu0 %v376
    %594 = vmatpush2.msra.mxu0 %v375
    %595 = vmatprep.subr.mxu0 %v373
    %596 = vmatpush2.msra.mxu0 %v372
    %597 = vmatprep.mubr.f32.mxu0 %v321
    %598 = vmatmul.mubr.f32.gmra.mxu0 %v320
    %v599 = vpop.f32.mrf.mxu0
    %v600 = vadd.f32 %v521, %v599
    %v601 = vpop.f32.mrf.mxu0
    %v602 = vadd.f32 %v525, %v601
    %603 = vdwg.mxu0
    %604 = vmatprep.subr.mxu0 %v466
    %605 = vmatpush1.msra.mxu0 %v465
    %606 = vmatprep.subr.mxu0 %v463
    %607 = vmatpush1.msra.mxu0 %v462
    %608 = vmatprep.subr.mxu0 %v460
    %609 = vmatpush1.msra.mxu0 %v459
    %610 = vmatprep.subr.mxu0 %v457
    %611 = vmatpush1.msra.mxu0 %v456
    %612 = vmatprep.subr.mxu0 %v454
    %613 = vmatpush1.msra.mxu0 %v453
    %614 = vmatprep.subr.mxu0 %v451
    %615 = vmatpush1.msra.mxu0 %v450
    %616 = vmatprep.subr.mxu0 %v448
    %617 = vmatpush1.msra.mxu0 %v447
    %618 = vmatprep.subr.mxu0 %v445
    %619 = vmatpush1.msra.mxu0 %v444
    %620 = vmatprep.subr.mxu0 %v442
    %621 = vmatpush1.msra.mxu0 %v441
    %622 = vmatprep.subr.mxu0 %v439
    %623 = vmatpush1.msra.mxu0 %v438
    %624 = vmatprep.subr.mxu0 %v436
    %625 = vmatpush1.msra.mxu0 %v435
    %626 = vmatprep.subr.mxu0 %v433
    %627 = vmatpush1.msra.mxu0 %v432
    %628 = vmatprep.subr.mxu0 %v430
    %629 = vmatpush1.msra.mxu0 %v429
    %630 = vmatprep.subr.mxu0 %v427
    %631 = vmatpush1.msra.mxu0 %v426
    %632 = vmatprep.subr.mxu0 %v424
    %633 = vmatpush1.msra.mxu0 %v423
    %634 = vmatprep.subr.mxu0 %v421
    %635 = vmatpush1.msra.mxu0 %v420
    %636 = vmatprep.subr.mxu0 %v514
    %637 = vmatpush2.msra.mxu0 %v513
    %638 = vmatprep.subr.mxu0 %v511
    %639 = vmatpush2.msra.mxu0 %v510
    %640 = vmatprep.subr.mxu0 %v508
    %641 = vmatpush2.msra.mxu0 %v507
    %642 = vmatprep.subr.mxu0 %v505
    %643 = vmatpush2.msra.mxu0 %v504
    %644 = vmatprep.subr.mxu0 %v502
    %645 = vmatpush2.msra.mxu0 %v501
    %646 = vmatprep.subr.mxu0 %v499
    %647 = vmatpush2.msra.mxu0 %v498
    %648 = vmatprep.subr.mxu0 %v496
    %649 = vmatpush2.msra.mxu0 %v495
    %650 = vmatprep.subr.mxu0 %v493
    %651 = vmatpush2.msra.mxu0 %v492
    %652 = vmatprep.subr.mxu0 %v490
    %653 = vmatpush2.msra.mxu0 %v489
    %654 = vmatprep.subr.mxu0 %v487
    %655 = vmatpush2.msra.mxu0 %v486
    %656 = vmatprep.subr.mxu0 %v484
    %657 = vmatpush2.msra.mxu0 %v483
    %658 = vmatprep.subr.mxu0 %v481
    %659 = vmatpush2.msra.mxu0 %v480
    %660 = vmatprep.subr.mxu0 %v478
    %661 = vmatpush2.msra.mxu0 %v477
    %662 = vmatprep.subr.mxu0 %v475
    %663 = vmatpush2.msra.mxu0 %v474
    %664 = vmatprep.subr.mxu0 %v472
    %665 = vmatpush2.msra.mxu0 %v471
    %666 = vmatprep.subr.mxu0 %v469
    %667 = vmatpush2.msra.mxu0 %v468
    %668 = vmatprep.mubr.f32.mxu0 %v323
    %669 = vmatmul.mubr.f32.gmra.mxu0 %v322
    %v670 = vpop.f32.mrf.mxu0
    %v671 = vadd.f32 %v600, %v670
    %v672 = vpop.f32.mrf.mxu0
    %v673 = vadd.f32 %v602, %v672
    %674 = vdwg.mxu0
    %675 = vmatprep.subr.mxu0 0.0
    %676 = vmatpush1.msra.mxu0 %v371
    %677 = vmatprep.subr.mxu0 0.0
    %678 = vmatpush1.msra.mxu0 %v368
    %679 = vmatprep.subr.mxu0 0.0
    %680 = vmatpush1.msra.mxu0 %v365
    %681 = vmatprep.subr.mxu0 0.0
    %682 = vmatpush1.msra.mxu0 %v362
    %683 = vmatprep.subr.mxu0 0.0
    %684 = vmatpush1.msra.mxu0 %v359
    %685 = vmatprep.subr.mxu0 0.0
    %686 = vmatpush1.msra.mxu0 %v356
    %687 = vmatprep.subr.mxu0 0.0
    %688 = vmatpush1.msra.mxu0 %v353
    %689 = vmatprep.subr.mxu0 0.0
    %690 = vmatpush1.msra.mxu0 %v350
    %691 = vmatprep.subr.mxu0 0.0
    %692 = vmatpush1.msra.mxu0 %v347
    %693 = vmatprep.subr.mxu0 0.0
    %694 = vmatpush1.msra.mxu0 %v344
    %695 = vmatprep.subr.mxu0 0.0
    %696 = vmatpush1.msra.mxu0 %v341
    %697 = vmatprep.subr.mxu0 0.0
    %698 = vmatpush1.msra.mxu0 %v338
    %699 = vmatprep.subr.mxu0 0.0
    %700 = vmatpush1.msra.mxu0 %v335
    %701 = vmatprep.subr.mxu0 0.0
    %702 = vmatpush1.msra.mxu0 %v332
    %703 = vmatprep.subr.mxu0 0.0
    %704 = vmatpush1.msra.mxu0 %v329
    %705 = vmatprep.subr.mxu0 0.0
    %706 = vmatpush1.msra.mxu0 %v326
    %707 = vmatprep.subr.mxu0 0.0
    %708 = vmatpush2.msra.mxu0 %v419
    %709 = vmatprep.subr.mxu0 0.0
    %710 = vmatpush2.msra.mxu0 %v416
    %711 = vmatprep.subr.mxu0 0.0
    %712 = vmatpush2.msra.mxu0 %v413
    %713 = vmatprep.subr.mxu0 0.0
    %714 = vmatpush2.msra.mxu0 %v410
    %715 = vmatprep.subr.mxu0 0.0
    %716 = vmatpush2.msra.mxu0 %v407
    %717 = vmatprep.subr.mxu0 0.0
    %718 = vmatpush2.msra.mxu0 %v404
    %719 = vmatprep.subr.mxu0 0.0
    %720 = vmatpush2.msra.mxu0 %v401
    %721 = vmatprep.subr.mxu0 0.0
    %722 = vmatpush2.msra.mxu0 %v398
    %723 = vmatprep.subr.mxu0 0.0
    %724 = vmatpush2.msra.mxu0 %v395
    %725 = vmatprep.subr.mxu0 0.0
    %726 = vmatpush2.msra.mxu0 %v392
    %727 = vmatprep.subr.mxu0 0.0
    %728 = vmatpush2.msra.mxu0 %v389
    %729 = vmatprep.subr.mxu0 0.0
    %730 = vmatpush2.msra.mxu0 %v386
    %731 = vmatprep.subr.mxu0 0.0
    %732 = vmatpush2.msra.mxu0 %v383
    %733 = vmatprep.subr.mxu0 0.0
    %734 = vmatpush2.msra.mxu0 %v380
    %735 = vmatprep.subr.mxu0 0.0
    %736 = vmatpush2.msra.mxu0 %v377
    %737 = vmatprep.subr.mxu0 0.0
    %738 = vmatpush2.msra.mxu0 %v374
    %739 = vmatprep.mubr.f32.mxu0 %v321
    %740 = vmatmul.mubr.f32.gmra.mxu0 %v320
    %v741 = vpop.f32.mrf.mxu0
    %v742 = vadd.f32 %v529, %v741
    %v743 = vpop.f32.mrf.mxu0
    %744 = vdwg.mxu0
    %745 = vmatprep.subr.mxu0 0.0
    %746 = vmatpush1.msra.mxu0 %v467
    %747 = vmatprep.subr.mxu0 0.0
    %748 = vmatpush1.msra.mxu0 %v464
    %749 = vmatprep.subr.mxu0 0.0
    %750 = vmatpush1.msra.mxu0 %v461
    %751 = vmatprep.subr.mxu0 0.0
    %752 = vmatpush1.msra.mxu0 %v458
    %753 = vmatprep.subr.mxu0 0.0
    %754 = vmatpush1.msra.mxu0 %v455
    %755 = vmatprep.subr.mxu0 0.0
    %756 = vmatpush1.msra.mxu0 %v452
    %757 = vmatprep.subr.mxu0 0.0
    %758 = vmatpush1.msra.mxu0 %v449
    %759 = vmatprep.subr.mxu0 0.0
    %760 = vmatpush1.msra.mxu0 %v446
    %761 = vmatprep.subr.mxu0 0.0
    %762 = vmatpush1.msra.mxu0 %v443
    %763 = vmatprep.subr.mxu0 0.0
    %764 = vmatpush1.msra.mxu0 %v440
    %765 = vmatprep.subr.mxu0 0.0
    %766 = vmatpush1.msra.mxu0 %v437
    %767 = vmatprep.subr.mxu0 0.0
    %768 = vmatpush1.msra.mxu0 %v434
    %769 = vmatprep.subr.mxu0 0.0
    %770 = vmatpush1.msra.mxu0 %v431
    %771 = vmatprep.subr.mxu0 0.0
    %772 = vmatpush1.msra.mxu0 %v428
    %773 = vmatprep.subr.mxu0 0.0
    %774 = vmatpush1.msra.mxu0 %v425
    %775 = vmatprep.subr.mxu0 0.0
    %776 = vmatpush1.msra.mxu0 %v422
    %777 = vmatprep.subr.mxu0 0.0
    %778 = vmatpush2.msra.mxu0 %v515
    %779 = vmatprep.subr.mxu0 0.0
    %780 = vmatpush2.msra.mxu0 %v512
    %781 = vmatprep.subr.mxu0 0.0
    %782 = vmatpush2.msra.mxu0 %v509
    %783 = vmatprep.subr.mxu0 0.0
    %784 = vmatpush2.msra.mxu0 %v506
    %785 = vmatprep.subr.mxu0 0.0
    %786 = vmatpush2.msra.mxu0 %v503
    %787 = vmatprep.subr.mxu0 0.0
    %788 = vmatpush2.msra.mxu0 %v500
    %789 = vmatprep.subr.mxu0 0.0
    %790 = vmatpush2.msra.mxu0 %v497
    %791 = vmatprep.subr.mxu0 0.0
    %792 = vmatpush2.msra.mxu0 %v494
    %793 = vmatprep.subr.mxu0 0.0
    %794 = vmatpush2.msra.mxu0 %v491
    %795 = vmatprep.subr.mxu0 0.0
    %796 = vmatpush2.msra.mxu0 %v488
    %797 = vmatprep.subr.mxu0 0.0
    %798 = vmatpush2.msra.mxu0 %v485
    %799 = vmatprep.subr.mxu0 0.0
    %800 = vmatpush2.msra.mxu0 %v482
    %801 = vmatprep.subr.mxu0 0.0
    %802 = vmatpush2.msra.mxu0 %v479
    %803 = vmatprep.subr.mxu0 0.0
    %804 = vmatpush2.msra.mxu0 %v476
    %805 = vmatprep.subr.mxu0 0.0
    %806 = vmatpush2.msra.mxu0 %v473
    %807 = vmatprep.subr.mxu0 0.0
    %808 = vmatpush2.msra.mxu0 %v470
    %809 = vmatprep.mubr.f32.mxu0 %v323
    %810 = vmatmul.mubr.f32.gmra.mxu0 %v322
    %v811 = vpop.f32.mrf.mxu0
    %v812 = vadd.f32 %v742, %v811
    %v813 = vpop.f32.mrf.mxu0
    %814 = vdwg.mxu0
    %v815 = vmax.f32 %v671, 0.0
    %v816 = vmax.f32 %v673, 0.0
    %v817 = vmax.f32 %v812, 0.0
    %v818 = vld [vmem:[#allocation10] sm:$0xff]
    %v819 = vld [vmem:[#allocation10 + $0x8] sm:$0xff]
    %v820 = vld [vmem:[#allocation10 + $0x10] sm:$0xff]
    %v821 = vld [vmem:[#allocation10 + $0x18] sm:$0xff]
    %v822 = vld [vmem:[#allocation10 + $0x20] sm:$0xff]
    %v823 = vld [vmem:[#allocation10 + $0x28] sm:$0xff]
    %v824 = vld [vmem:[#allocation10 + $0x30] sm:$0xff]
    %v825 = vld [vmem:[#allocation10 + $0x38] sm:$0xff]
    %v826 = vld [vmem:[#allocation10 + $0x40] sm:$0xff]
    %v827 = vld [vmem:[#allocation10 + $0x48] sm:$0xff]
    %v828 = vld [vmem:[#allocation10 + $0x50] sm:$0xff]
    %v829 = vld [vmem:[#allocation10 + $0x58] sm:$0xff]
    %v830 = vld [vmem:[#allocation10 + $0x60] sm:$0xff]
    %v831 = vld [vmem:[#allocation10 + $0x68] sm:$0xff]
    %v832 = vld [vmem:[#allocation10 + $0x70] sm:$0xff]
    %v833 = vld [vmem:[#allocation10 + $0x78] sm:$0xff]
    %v834 = vld [vmem:[#allocation10 + $0x80] sm:$0xff]
    %v835 = vld [vmem:[#allocation10 + $0x88] sm:$0xff]
    %v836 = vld [vmem:[#allocation10 + $0x90] sm:$0xff]
    %v837 = vld [vmem:[#allocation10 + $0x98] sm:$0xff]
    %v838 = vld [vmem:[#allocation10 + $0xa0] sm:$0xff]
    %v839 = vld [vmem:[#allocation10 + $0xa8] sm:$0xff]
    %v840 = vld [vmem:[#allocation10 + $0xb0] sm:$0xff]
    %v841 = vld [vmem:[#allocation10 + $0xb8] sm:$0xff]
    %v842 = vld [vmem:[#allocation10 + $0xc0] sm:$0xff]
    %v843 = vld [vmem:[#allocation10 + $0xc8] sm:$0xff]
    %v844 = vld [vmem:[#allocation10 + $0xd0] sm:$0xff]
    %v845 = vld [vmem:[#allocation10 + $0xd8] sm:$0xff]
    %v846 = vld [vmem:[#allocation10 + $0xe0] sm:$0xff]
    %v847 = vld [vmem:[#allocation10 + $0xe8] sm:$0xff]
    %v848 = vld [vmem:[#allocation10 + $0xf0] sm:$0xff]
    %v849 = vld [vmem:[#allocation10 + $0xf8] sm:$0xff]
    %v850 = vld [vmem:[#allocation10 + $0x100] sm:$0xff]
    %v851 = vld [vmem:[#allocation10 + $0x108] sm:$0xff]
    %v852 = vld [vmem:[#allocation10 + $0x110] sm:$0xff]
    %v853 = vld [vmem:[#allocation10 + $0x118] sm:$0xff]
    %v854 = vld [vmem:[#allocation10 + $0x120] sm:$0xff]
    %v855 = vld [vmem:[#allocation10 + $0x128] sm:$0xff]
    %v856 = vld [vmem:[#allocation10 + $0x130] sm:$0xff]
    %v857 = vld [vmem:[#allocation10 + $0x138] sm:$0xff]
    %v858 = vld [vmem:[#allocation10 + $0x140] sm:$0xff]
    %v859 = vld [vmem:[#allocation10 + $0x148] sm:$0xff]
    %v860 = vld [vmem:[#allocation10 + $0x150] sm:$0xff]
    %v861 = vld [vmem:[#allocation10 + $0x158] sm:$0xff]
    %v862 = vld [vmem:[#allocation10 + $0x160] sm:$0xff]
    %v863 = vld [vmem:[#allocation10 + $0x168] sm:$0xff]
    %v864 = vld [vmem:[#allocation10 + $0x170] sm:$0xff]
    %v865 = vld [vmem:[#allocation10 + $0x178] sm:$0xff]
    %v866 = vld [vmem:[%s6] sm:$0x1]
    %v868 = vlaneseq
    %v869 = vshrl.u32 %v868, 7
    %v870 = vsub.s32 0, %v869
    %v871 = vrot.slane %v866, %v870
    %873 = vmatprep.subr.mxu0 0.0
    %874 = vmatpush1.msra.mxu0 %v833
    %875 = vmatprep.subr.mxu0 0.0
    %876 = vmatpush1.msra.mxu0 %v832
    %877 = vmatprep.subr.mxu0 0.0
    %878 = vmatpush1.msra.mxu0 %v831
    %879 = vmatprep.subr.mxu0 0.0
    %880 = vmatpush1.msra.mxu0 %v830
    %881 = vmatprep.subr.mxu0 0.0
    %882 = vmatpush1.msra.mxu0 %v829
    %883 = vmatprep.subr.mxu0 0.0
    %884 = vmatpush1.msra.mxu0 %v828
    %885 = vmatprep.subr.mxu0 0.0
    %886 = vmatpush1.msra.mxu0 %v827
    %887 = vmatprep.subr.mxu0 0.0
    %888 = vmatpush1.msra.mxu0 %v826
    %889 = vmatprep.subr.mxu0 0.0
    %890 = vmatpush1.msra.mxu0 %v825
    %891 = vmatprep.subr.mxu0 0.0
    %892 = vmatpush1.msra.mxu0 %v824
    %893 = vmatprep.subr.mxu0 0.0
    %894 = vmatpush1.msra.mxu0 %v823
    %895 = vmatprep.subr.mxu0 0.0
    %896 = vmatpush1.msra.mxu0 %v822
    %897 = vmatprep.subr.mxu0 0.0
    %898 = vmatpush1.msra.mxu0 %v821
    %899 = vmatprep.subr.mxu0 0.0
    %900 = vmatpush1.msra.mxu0 %v820
    %901 = vmatprep.subr.mxu0 0.0
    %902 = vmatpush1.msra.mxu0 %v819
    %903 = vmatprep.subr.mxu0 0.0
    %904 = vmatpush1.msra.mxu0 %v818
    %905 = vmatprep.subr.mxu0 0.0
    %906 = vmatpush2.msra.mxu0 %v849
    %907 = vmatprep.subr.mxu0 0.0
    %908 = vmatpush2.msra.mxu0 %v848
    %909 = vmatprep.subr.mxu0 0.0
    %910 = vmatpush2.msra.mxu0 %v847
    %911 = vmatprep.subr.mxu0 0.0
    %912 = vmatpush2.msra.mxu0 %v846
    %913 = vmatprep.subr.mxu0 0.0
    %914 = vmatpush2.msra.mxu0 %v845
    %915 = vmatprep.subr.mxu0 0.0
    %916 = vmatpush2.msra.mxu0 %v844
    %917 = vmatprep.subr.mxu0 0.0
    %918 = vmatpush2.msra.mxu0 %v843
    %919 = vmatprep.subr.mxu0 0.0
    %920 = vmatpush2.msra.mxu0 %v842
    %921 = vmatprep.subr.mxu0 0.0
    %922 = vmatpush2.msra.mxu0 %v841
    %923 = vmatprep.subr.mxu0 0.0
    %924 = vmatpush2.msra.mxu0 %v840
    %925 = vmatprep.subr.mxu0 0.0
    %926 = vmatpush2.msra.mxu0 %v839
    %927 = vmatprep.subr.mxu0 0.0
    %928 = vmatpush2.msra.mxu0 %v838
    %929 = vmatprep.subr.mxu0 0.0
    %930 = vmatpush2.msra.mxu0 %v837
    %931 = vmatprep.subr.mxu0 0.0
    %932 = vmatpush2.msra.mxu0 %v836
    %933 = vmatprep.subr.mxu0 0.0
    %934 = vmatpush2.msra.mxu0 %v835
    %935 = vmatprep.subr.mxu0 0.0
    %936 = vmatpush2.msra.mxu0 %v834
    %937 = vmatprep.mubr.f32.mxu0 %v816
    %938 = vmatmul.mubr.f32.gmra.mxu0 %v815
    %v939 = vpop.f32.mrf.mxu0
    %v940 = vadd.f32 %v871, %v939
    %v941 = vpop.f32.mrf.mxu0
    %942 = vdwg.mxu0
    %943 = vmatprep.subr.mxu0 0.0
    %944 = vmatpush1.msra.mxu0 %v865
    %945 = vmatprep.subr.mxu0 0.0
    %946 = vmatpush1.msra.mxu0 %v864
    %947 = vmatprep.subr.mxu0 0.0
    %948 = vmatpush1.msra.mxu0 %v863
    %949 = vmatprep.subr.mxu0 0.0
    %950 = vmatpush1.msra.mxu0 %v862
    %951 = vmatprep.subr.mxu0 0.0
    %952 = vmatpush1.msra.mxu0 %v861
    %953 = vmatprep.subr.mxu0 0.0
    %954 = vmatpush1.msra.mxu0 %v860
    %955 = vmatprep.subr.mxu0 0.0
    %956 = vmatpush1.msra.mxu0 %v859
    %957 = vmatprep.subr.mxu0 0.0
    %958 = vmatpush1.msra.mxu0 %v858
    %959 = vmatprep.subr.mxu0 0.0
    %960 = vmatpush1.msra.mxu0 %v857
    %961 = vmatprep.subr.mxu0 0.0
    %962 = vmatpush1.msra.mxu0 %v856
    %963 = vmatprep.subr.mxu0 0.0
    %964 = vmatpush1.msra.mxu0 %v855
    %965 = vmatprep.subr.mxu0 0.0
    %966 = vmatpush1.msra.mxu0 %v854
    %967 = vmatprep.subr.mxu0 0.0
    %968 = vmatpush1.msra.mxu0 %v853
    %969 = vmatprep.subr.mxu0 0.0
    %970 = vmatpush1.msra.mxu0 %v852
    %971 = vmatprep.subr.mxu0 0.0
    %972 = vmatpush1.msra.mxu0 %v851
    %973 = vmatprep.subr.mxu0 0.0
    %974 = vmatpush1.msra.mxu0 %v850
    %975 = vmatprep.subr.mxu0 0.0
    %976 = vmatpush2.msra.mxu0 0.0
    %977 = vmatprep.subr.mxu0 0.0
    %978 = vmatpush2.msra.mxu0 0.0
    %979 = vmatprep.subr.mxu0 0.0
    %980 = vmatpush2.msra.mxu0 0.0
    %981 = vmatprep.subr.mxu0 0.0
    %982 = vmatpush2.msra.mxu0 0.0
    %983 = vmatprep.subr.mxu0 0.0
    %984 = vmatpush2.msra.mxu0 0.0
    %985 = vmatprep.subr.mxu0 0.0
    %986 = vmatpush2.msra.mxu0 0.0
    %987 = vmatprep.subr.mxu0 0.0
    %988 = vmatpush2.msra.mxu0 0.0
    %989 = vmatprep.subr.mxu0 0.0
    %990 = vmatpush2.msra.mxu0 0.0
    %991 = vmatprep.subr.mxu0 0.0
    %992 = vmatpush2.msra.mxu0 0.0
    %993 = vmatprep.subr.mxu0 0.0
    %994 = vmatpush2.msra.mxu0 0.0
    %995 = vmatprep.subr.mxu0 0.0
    %996 = vmatpush2.msra.mxu0 0.0
    %997 = vmatprep.subr.mxu0 0.0
    %998 = vmatpush2.msra.mxu0 0.0
    %999 = vmatprep.subr.mxu0 0.0
    %1000 = vmatpush2.msra.mxu0 0.0
    %1001 = vmatprep.subr.mxu0 0.0
    %1002 = vmatpush2.msra.mxu0 0.0
    %1003 = vmatprep.subr.mxu0 0.0
    %1004 = vmatpush2.msra.mxu0 0.0
    %1005 = vmatprep.subr.mxu0 0.0
    %1006 = vmatpush2.msra.mxu0 0.0
    %1007 = vmatprep.mubr.f32.mxu0 0.0
    %1008 = vmatmul.mubr.f32.gmra.mxu0 %v817
    %v1009 = vpop.f32.mrf.mxu0
    %v1010 = vadd.f32 %v940, %v1009
    %v1011 = vpop.f32.mrf.mxu0
    %1012 = vdwg.mxu0
    %v1013 = vtanh.pop %v1010
    %v1014 = vmul.f32 %v1013, 2.0
    %1015 = vst [vmem:[#allocation11] sm:$0xff] %v1014
    // Predicated region
    $region50: #{tpu_custom_call.1} parent=1 // pred_check
      _
    $region51: #{tpu_custom_call.1} parent=1 // pred_check_branch
      %1017 = sbr.rel (0) target = $region53
    $region52: #{tpu_custom_call.1} parent=1 // pred_region
      %s1019 = ssub.s32 128, 128
      %1020 = vsyncadd [#allocation4], %s1019
      %s1022 = sshll.u32 [#allocation11], 4
      %s1023 = int_to_ptr.vmem [resolvable:$true] %s1022
      %1025 = dma.vmem_to_hbm [thread:$0]  %s1023, 128, %s7, [#allocation4]
    $region53: #{tpu_custom_call.1} parent=1 // pred_fallthru
      _
    // Predicated region
    $region54: #{tpu_custom_call.1} parent=1 // pred_check
      _
    $region55: #{tpu_custom_call.1} parent=1 // pred_check_branch
      %1027 = sbr.rel (0) target = $region57
    $region56: #{tpu_custom_call.1} parent=1 // pred_region
      %1028 = dma.done [#allocation4], 128
    $region57: #{tpu_custom_call.1} parent=1 // pred_fallthru
      _
    %1029 = vsyncpa [#allocation3], 1
    %1030 = vsyncpa [#allocation6], 1
    %1031 = vsyncpa [#allocation9], 1
    %1032 = vsyncpa [#allocation4], 1

// kernel: tpu_custom_call.1
$region0: #{tpu_custom_call.1}
  #allocation0 [shape = 'u32[]', space=smem, size = 0x4, offset = 0x4, fixed_abs, tag = 'smem constant byte address 0x4 - core index']
  #allocation1 [shape = 'u32[144,128]{1,0:T(1,128)}', space=vmem, size = 0x12000, scoped, tag = 'internal scratch']
  %s0 = inlined_call_operand.hbm [shape: f32[8,128], index: 0, kind: input, shape index: {}]
  %s1 = inlined_call_operand.hbm [shape: f32[128,512], index: 1, kind: input, shape index: {}]
  %s2 = inlined_call_operand.hbm [shape: f32[1,512], index: 2, kind: input, shape index: {}]
  %s3 = inlined_call_operand.hbm [shape: f32[512,384], index: 3, kind: input, shape index: {}]
  %s4 = inlined_call_operand.vmem [shape: f32[1,384], index: 4, kind: input, shape index: {}]
  %s5 = inlined_call_operand.hbm [shape: f32[384,128], index: 5, kind: input, shape index: {}]
  %s6 = inlined_call_operand.vmem [shape: f32[1,128], index: 6, kind: input, shape index: {}]
  %s7 = inlined_call_operand.hbm [shape: f32[8,128], index: 7, kind: output, shape index: {}]
  %s8 = sld [smem:[#allocation0]]
  $region58: #{tpu_custom_call.1} parent=0
    _
  %s10 = ssub.s32 1, %s8
  %s11 = scalar_select 0, %s10, %s8
  $region1: #{tpu_custom_call.1} parent=0
    #allocation2 [shape = 'u8[4096]{0}', space=vmem, size = 0x1000, scoped, tag = 'input window, operand 0, single buffered']
    #allocation3 [shape = 's32[1]{0}', space=sflag, size = 0x4, scoped, tag = 'scoped memory for tpu_custom_call.1']
    #allocation4 [shape = 's32[1]{0}', space=sflag, size = 0x4, scoped, tag = 'scoped memory for tpu_custom_call.1']
    #allocation5 [shape = 'u8[262144]{0}', space=vmem, size = 0x40000, scoped, tag = 'input window, operand 1, single buffered']
    #allocation6 [shape = 's32[1]{0}', space=sflag, size = 0x4, scoped, tag = 'scoped memory for tpu_custom_call.1']
    #allocation7 [shape = 'u8[2048]{0}', space=vmem, size = 0x800, scoped, tag = 'input window, operand 2, single buffered']
    #allocation8 [shape = 'u8[786432]{0}', space=vmem, size = 0xc0000, scoped, tag = 'input window, operand 3, single buffered']
    #allocation9 [shape = 's32[1]{0}', space=sflag, size = 0x4, scoped, tag = 'scoped memory for tpu_custom_call.1']
    #allocation10 [shape = 'u8[196608]{0}', space=vmem, size = 0x30000, scoped, tag = 'input window, operand 5, single buffered']
    #allocation11 [shape = 'u8[4096]{0}', space=vmem, size = 0x1000, scoped, tag = 'output window, operand 0, single buffered']
    %12 = vsyncpa [#allocation3], 0
    %13 = vsyncpa [#allocation6], 0
    %14 = vsyncpa [#allocation9], 0
    %15 = vsyncpa [#allocation4], 0
    // Predicated region
    $region2: #{tpu_custom_call.1} parent=1 // pred_check
      _
    $region3: #{tpu_custom_call.1} parent=1 // pred_check_branch
      %17 = sbr.rel (0) target = $region5
    $region4: #{tpu_custom_call.1} parent=1 // pred_region
      %s19 = ssub.s32 128, 128
      %20 = vsyncadd [#allocation3], %s19
      %s22 = sshll.u32 [#allocation2], 4
      %s23 = int_to_ptr.vmem [resolvable:$true] %s22
      %25 = dma.hbm_to_vmem [thread:$0]  %s0, 128, %s23, [#allocation3]
    $region5: #{tpu_custom_call.1} parent=1 // pred_fallthru
      _
    // Predicated region
    $region6: #{tpu_custom_call.1} parent=1 // pred_check
      _
    $region7: #{tpu_custom_call.1} parent=1 // pred_check_branch
      %27 = sbr.rel (0) target = $region9
    $region8: #{tpu_custom_call.1} parent=1 // pred_region
      %s29 = ssub.s32 8192, 8192
      %30 = vsyncadd [#allocation6], %s29
      %s31 = sshll.u32 [#allocation5], 4
      %s32 = int_to_ptr.vmem [resolvable:$true] %s31
      %37 = dma.hbm_to_vmem [thread:$0]  %s1, 8192, %s32, [#allocation6], 512, 512, 32
    $region9: #{tpu_custom_call.1} parent=1 // pred_fallthru
      _
    // Predicated region
    $region10: #{tpu_custom_call.1} parent=1 // pred_check
      _
    $region11: #{tpu_custom_call.1} parent=1 // pred_check_branch
      %39 = sbr.rel (0) target = $region13
    $region12: #{tpu_custom_call.1} parent=1 // pred_region
      %s41 = ssub.s32 64, 64
      %42 = vsyncadd [#allocation6], %s41
      %s44 = sshll.u32 [#allocation7], 4
      %s45 = int_to_ptr.vmem [resolvable:$true] %s44
      %47 = dma.hbm_to_vmem [thread:$0]  %s2, 64, %s45, [#allocation6]
    $region13: #{tpu_custom_call.1} parent=1 // pred_fallthru
      _
    // Predicated region
    $region14: #{tpu_custom_call.1} parent=1 // pred_check
      _
    $region15: #{tpu_custom_call.1} parent=1 // pred_check_branch
      %49 = sbr.rel (0) target = $region17
    $region16: #{tpu_custom_call.1} parent=1 // pred_region
      %s51 = ssub.s32 24576, 24576
      %52 = vsyncadd [#allocation9], %s51
      %s53 = sshll.u32 [#allocation8], 4
      %s54 = int_to_ptr.vmem [resolvable:$true] %s53
      %59 = dma.hbm_to_vmem [thread:$0]  %s3, 24576, %s54, [#allocation9], 384, 384, 24
    $region17: #{tpu_custom_call.1} parent=1 // pred_fallthru
      _
    // Predicated region
    $region18: #{tpu_custom_call.1} parent=1 // pred_check
      _
    $region19: #{tpu_custom_call.1} parent=1 // pred_check_branch
      %61 = sbr.rel (0) target = $region21
    $region20: #{tpu_custom_call.1} parent=1 // pred_region
      _
    $region21: #{tpu_custom_call.1} parent=1 // pred_fallthru
      _
    // Predicated region
    $region22: #{tpu_custom_call.1} parent=1 // pred_check
      _
    $region23: #{tpu_custom_call.1} parent=1 // pred_check_branch
      %63 = sbr.rel (0) target = $region25
    $region24: #{tpu_custom_call.1} parent=1 // pred_region
      %s65 = ssub.s32 6144, 6144
      %66 = vsyncadd [#allocation9], %s65
      %s67 = sshll.u32 [#allocation10], 4
      %s68 = int_to_ptr.vmem [resolvable:$true] %s67
      %73 = dma.hbm_to_vmem [thread:$0]  %s5, 6144, %s68, [#allocation9], 128, 128, 8
    $region25: #{tpu_custom_call.1} parent=1 // pred_fallthru
      _
    // Predicated region
    $region26: #{tpu_custom_call.1} parent=1 // pred_check
      _
    $region27: #{tpu_custom_call.1} parent=1 // pred_check_branch
      %75 = sbr.rel (0) target = $region29
    $region28: #{tpu_custom_call.1} parent=1 // pred_region
      _
    $region29: #{tpu_custom_call.1} parent=1 // pred_fallthru
      _
    // Predicated region
    $region30: #{tpu_custom_call.1} parent=1 // pred_check
      _
    $region31: #{tpu_custom_call.1} parent=1 // pred_check_branch
      %77 = sbr.rel (0) target = $region33
    $region32: #{tpu_custom_call.1} parent=1 // pred_region
      %78 = dma.done [#allocation3], 128
    $region33: #{tpu_custom_call.1} parent=1 // pred_fallthru
      _
    // Predicated region
    $region34: #{tpu_custom_call.1} parent=1 // pred_check
      _
    $region35: #{tpu_custom_call.1} parent=1 // pred_check_branch
      %80 = sbr.rel (0) target = $region37
    $region36: #{tpu_custom_call.1} parent=1 // pred_region
      %81 = dma.done [#allocation6], 8192
    $region37: #{tpu_custom_call.1} parent=1 // pred_fallthru
      _
    // Predicated region
    $region38: #{tpu_custom_call.1} parent=1 // pred_check
      _
    $region39: #{tpu_custom_call.1} parent=1 // pred_check_branch
      %83 = sbr.rel (0) target = $region41
    $region40: #{tpu_custom_call.1} parent=1 // pred_region
      %84 = dma.done [#allocation6], 64
    $region41: #{tpu_custom_call.1} parent=1 // pred_fallthru
      _
    // Predicated region
    $region42: #{tpu_custom_call.1} parent=1 // pred_check
      _
    $region43: #{tpu_custom_call.1} parent=1 // pred_check_branch
      %86 = sbr.rel (0) target = $region45
    $region44: #{tpu_custom_call.1} parent=1 // pred_region
      %87 = dma.done [#allocation9], 24576
    $region45: #{tpu_custom_call.1} parent=1 // pred_fallthru
      _
    // Predicated region
    $region46: #{tpu_custom_call.1} parent=1 // pred_check
      _
    $region47: #{tpu_custom_call.1} parent=1 // pred_check_branch
      %89 = sbr.rel (0) target = $region49
    $region48: #{tpu_custom_call.1} parent=1 // pred_region
      %90 = dma.done [#allocation9], 6144
    $region49: #{tpu_custom_call.1} parent=1 // pred_fallthru
      _
    %v91 = vld [vmem:[#allocation2] sm:$0xff]
    %v92 = vld [vmem:[#allocation5] sm:$0xff]
    %v93 = vld [vmem:[#allocation5 + $0x8] sm:$0xff]
    %v94 = vld [vmem:[#allocation5 + $0x10] sm:$0xff]
    %v95 = vld [vmem:[#allocation5 + $0x18] sm:$0xff]
    %v96 = vld [vmem:[#allocation5 + $0x20] sm:$0xff]
    %v97 = vld [vmem:[#allocation5 + $0x28] sm:$0xff]
    %v98 = vld [vmem:[#allocation5 + $0x30] sm:$0xff]
    %v99 = vld [vmem:[#allocation5 + $0x38] sm:$0xff]
    %v100 = vld [vmem:[#allocation5 + $0x40] sm:$0xff]
    %v101 = vld [vmem:[#allocation5 + $0x48] sm:$0xff]
    %v102 = vld [vmem:[#allocation5 + $0x50] sm:$0xff]
    %v103 = vld [vmem:[#allocation5 + $0x58] sm:$0xff]
    %v104 = vld [vmem:[#allocation5 + $0x60] sm:$0xff]
    %v105 = vld [vmem:[#allocation5 + $0x68] sm:$0xff]
    %v106 = vld [vmem:[#allocation5 + $0x70] sm:$0xff]
    %v107 = vld [vmem:[#allocation5 + $0x78] sm:$0xff]
    %v108 = vld [vmem:[#allocation5 + $0x80] sm:$0xff]
    %v109 = vld [vmem:[#allocation5 + $0x88] sm:$0xff]
    %v110 = vld [vmem:[#allocation5 + $0x90] sm:$0xff]
    %v111 = vld [vmem:[#allocation5 + $0x98] sm:$0xff]
    %v112 = vld [vmem:[#allocation5 + $0xa0] sm:$0xff]
    %v113 = vld [vmem:[#allocation5 + $0xa8] sm:$0xff]
    %v114 = vld [vmem:[#allocation5 + $0xb0] sm:$0xff]
    %v115 = vld [vmem:[#allocation5 + $0xb8] sm:$0xff]
    %v116 = vld [vmem:[#allocation5 + $0xc0] sm:$0xff]
    %v117 = vld [vmem:[#allocation5 + $0xc8] sm:$0xff]
    %v118 = vld [vmem:[#allocation5 + $0xd0] sm:$0xff]
    %v119 = vld [vmem:[#allocation5 + $0xd8] sm:$0xff]
    %v120 = vld [vmem:[#allocation5 + $0xe0] sm:$0xff]
    %v121 = vld [vmem:[#allocation5 + $0xe8] sm:$0xff]
    %v122 = vld [vmem:[#allocation5 + $0xf0] sm:$0xff]
    %v123 = vld [vmem:[#allocation5 + $0xf8] sm:$0xff]
    %v124 = vld [vmem:[#allocation5 + $0x100] sm:$0xff]
    %v125 = vld [vmem:[#allocation5 + $0x108] sm:$0xff]
    %v126 = vld [vmem:[#allocation5 + $0x110] sm:$0xff]
    %v127 = vld [vmem:[#allocation5 + $0x118] sm:$0xff]
    %v128 = vld [vmem:[#allocation5 + $0x120] sm:$0xff]
    %v129 = vld [vmem:[#allocation5 + $0x128] sm:$0xff]
    %v130 = vld [vmem:[#allocation5 + $0x130] sm:$0xff]
    %v131 = vld [vmem:[#allocation5 + $0x138] sm:$0xff]
    %v132 = vld [vmem:[#allocation5 + $0x140] sm:$0xff]
    %v133 = vld [vmem:[#allocation5 + $0x148] sm:$0xff]
    %v134 = vld [vmem:[#allocation5 + $0x150] sm:$0xff]
    %v135 = vld [vmem:[#allocation5 + $0x158] sm:$0xff]
    %v136 = vld [vmem:[#allocation5 + $0x160] sm:$0xff]
    %v137 = vld [vmem:[#allocation5 + $0x168] sm:$0xff]
    %v138 = vld [vmem:[#allocation5 + $0x170] sm:$0xff]
    %v139 = vld [vmem:[#allocation5 + $0x178] sm:$0xff]
    %v140 = vld [vmem:[#allocation5 + $0x180] sm:$0xff]
    %v141 = vld [vmem:[#allocation5 + $0x188] sm:$0xff]
    %v142 = vld [vmem:[#allocation5 + $0x190] sm:$0xff]
    %v143 = vld [vmem:[#allocation5 + $0x198] sm:$0xff]
    %v144 = vld [vmem:[#allocation5 + $0x1a0] sm:$0xff]
    %v145 = vld [vmem:[#allocation5 + $0x1a8] sm:$0xff]
    %v146 = vld [vmem:[#allocation5 + $0x1b0] sm:$0xff]
    %v147 = vld [vmem:[#allocation5 + $0x1b8] sm:$0xff]
    %v148 = vld [vmem:[#allocation5 + $0x1c0] sm:$0xff]
    %v149 = vld [vmem:[#allocation5 + $0x1c8] sm:$0xff]
    %v150 = vld [vmem:[#allocation5 + $0x1d0] sm:$0xff]
    %v151 = vld [vmem:[#allocation5 + $0x1d8] sm:$0xff]
    %v152 = vld [vmem:[#allocation5 + $0x1e0] sm:$0xff]
    %v153 = vld [vmem:[#allocation5 + $0x1e8] sm:$0xff]
    %v154 = vld [vmem:[#allocation5 + $0x1f0] sm:$0xff]
    %v155 = vld [vmem:[#allocation5 + $0x1f8] sm:$0xff]
    %v156 = vld [vmem:[#allocation7] sm:$0xf]
    %v158 = vlaneseq
    %v159 = vshrl.u32 %v158, 7
    %v160 = vsub.s32 0, %v159
    %v161 = vrot.slane %v156, %v160
    %v162 = vlaneseq
    %v163 = vshrl.u32 %v162, 7
    %v164 = vsub.s32 1, %v163
    %v165 = vrot.slane %v156, %v164
    %v166 = vlaneseq
    %v167 = vshrl.u32 %v166, 7
    %v168 = vsub.s32 2, %v167
    %v169 = vrot.slane %v156, %v168
    %v170 = vlaneseq
    %v171 = vshrl.u32 %v170, 7
    %v172 = vsub.s32 3, %v171
    %v173 = vrot.slane %v156, %v172
    %178 = vmatprep.subr.mxu0 %v153
    %179 = vmatpush1.msra.mxu0 %v152
    %180 = vmatprep.subr.mxu0 %v149
    %181 = vmatpush1.msra.mxu0 %v148
    %182 = vmatprep.subr.mxu0 %v145
    %183 = vmatpush1.msra.mxu0 %v144
    %184 = vmatprep.subr.mxu0 %v141
    %185 = vmatpush1.msra.mxu0 %v140
    %186 = vmatprep.subr.mxu0 %v137
    %187 = vmatpush1.msra.mxu0 %v136
    %188 = vmatprep.subr.mxu0 %v133
    %189 = vmatpush1.msra.mxu0 %v132
    %190 = vmatprep.subr.mxu0 %v129
    %191 = vmatpush1.msra.mxu0 %v128
    %192 = vmatprep.subr.mxu0 %v125
    %193 = vmatpush1.msra.mxu0 %v124
    %194 = vmatprep.subr.mxu0 %v121
    %195 = vmatpush1.msra.mxu0 %v120
    %196 = vmatprep.subr.mxu0 %v117
    %197 = vmatpush1.msra.mxu0 %v116
    %198 = vmatprep.subr.mxu0 %v113
    %199 = vmatpush1.msra.mxu0 %v112
    %200 = vmatprep.subr.mxu0 %v109
    %201 = vmatpush1.msra.mxu0 %v108
    %202 = vmatprep.subr.mxu0 %v105
    %203 = vmatpush1.msra.mxu0 %v104
    %204 = vmatprep.subr.mxu0 %v101
    %205 = vmatpush1.msra.mxu0 %v100
    %206 = vmatprep.subr.mxu0 %v97
    %207 = vmatpush1.msra.mxu0 %v96
    %208 = vmatprep.subr.mxu0 %v93
    %209 = vmatpush1.msra.mxu0 %v92
    %210 = vmatprep.subr.mxu0 0.0
    %211 = vmatpush2.msra.mxu0 0.0
    %212 = vmatprep.subr.mxu0 0.0
    %213 = vmatpush2.msra.mxu0 0.0
    %214 = vmatprep.subr.mxu0 0.0
    %215 = vmatpush2.msra.mxu0 0.0
    %216 = vmatprep.subr.mxu0 0.0
    %217 = vmatpush2.msra.mxu0 0.0
    %218 = vmatprep.subr.mxu0 0.0
    %219 = vmatpush2.msra.mxu0 0.0
    %220 = vmatprep.subr.mxu0 0.0
    %221 = vmatpush2.msra.mxu0 0.0
    %222 = vmatprep.subr.mxu0 0.0
    %223 = vmatpush2.msra.mxu0 0.0
    %224 = vmatprep.subr.mxu0 0.0
    %225 = vmatpush2.msra.mxu0 0.0
    %226 = vmatprep.subr.mxu0 0.0
    %227 = vmatpush2.msra.mxu0 0.0
    %228 = vmatprep.subr.mxu0 0.0
    %229 = vmatpush2.msra.mxu0 0.0
    %230 = vmatprep.subr.mxu0 0.0
    %231 = vmatpush2.msra.mxu0 0.0
    %232 = vmatprep.subr.mxu0 0.0
    %233 = vmatpush2.msra.mxu0 0.0
    %234 = vmatprep.subr.mxu0 0.0
    %235 = vmatpush2.msra.mxu0 0.0
    %236 = vmatprep.subr.mxu0 0.0
    %237 = vmatpush2.msra.mxu0 0.0
    %238 = vmatprep.subr.mxu0 0.0
    %239 = vmatpush2.msra.mxu0 0.0
    %240 = vmatprep.subr.mxu0 0.0
    %241 = vmatpush2.msra.mxu0 0.0
    %242 = vmatprep.mubr.f32.mxu0 0.0
    %243 = vmatmul.mubr.f32.gmra.mxu0 %v91
    %v244 = vpop.f32.mrf.mxu0
    %v245 = vadd.f32 %v161, %v244
    %v246 = vpop.f32.mrf.mxu0
    %v247 = vadd.f32 %v165, %v246
    %248 = vdwg.mxu0
    %249 = vmatprep.subr.mxu0 %v155
    %250 = vmatpush1.msra.mxu0 %v154
    %251 = vmatprep.subr.mxu0 %v151
    %252 = vmatpush1.msra.mxu0 %v150
    %253 = vmatprep.subr.mxu0 %v147
    %254 = vmatpush1.msra.mxu0 %v146
    %255 = vmatprep.subr.mxu0 %v143
    %256 = vmatpush1.msra.mxu0 %v142
    %257 = vmatprep.subr.mxu0 %v139
    %258 = vmatpush1.msra.mxu0 %v138
    %259 = vmatprep.subr.mxu0 %v135
    %260 = vmatpush1.msra.mxu0 %v134
    %261 = vmatprep.subr.mxu0 %v131
    %262 = vmatpush1.msra.mxu0 %v130
    %263 = vmatprep.subr.mxu0 %v127
    %264 = vmatpush1.msra.mxu0 %v126
    %265 = vmatprep.subr.mxu0 %v123
    %266 = vmatpush1.msra.mxu0 %v122
    %267 = vmatprep.subr.mxu0 %v119
    %268 = vmatpush1.msra.mxu0 %v118
    %269 = vmatprep.subr.mxu0 %v115
    %270 = vmatpush1.msra.mxu0 %v114
    %271 = vmatprep.subr.mxu0 %v111
    %272 = vmatpush1.msra.mxu0 %v110
    %273 = vmatprep.subr.mxu0 %v107
    %274 = vmatpush1.msra.mxu0 %v106
    %275 = vmatprep.subr.mxu0 %v103
    %276 = vmatpush1.msra.mxu0 %v102
    %277 = vmatprep.subr.mxu0 %v99
    %278 = vmatpush1.msra.mxu0 %v98
    %279 = vmatprep.subr.mxu0 %v95
    %280 = vmatpush1.msra.mxu0 %v94
    %281 = vmatprep.subr.mxu0 0.0
    %282 = vmatpush2.msra.mxu0 0.0
    %283 = vmatprep.subr.mxu0 0.0
    %284 = vmatpush2.msra.mxu0 0.0
    %285 = vmatprep.subr.mxu0 0.0
    %286 = vmatpush2.msra.mxu0 0.0
    %287 = vmatprep.subr.mxu0 0.0
    %288 = vmatpush2.msra.mxu0 0.0
    %289 = vmatprep.subr.mxu0 0.0
    %290 = vmatpush2.msra.mxu0 0.0
    %291 = vmatprep.subr.mxu0 0.0
    %292 = vmatpush2.msra.mxu0 0.0
    %293 = vmatprep.subr.mxu0 0.0
    %294 = vmatpush2.msra.mxu0 0.0
    %295 = vmatprep.subr.mxu0 0.0
    %296 = vmatpush2.msra.mxu0 0.0
    %297 = vmatprep.subr.mxu0 0.0
    %298 = vmatpush2.msra.mxu0 0.0
    %299 = vmatprep.subr.mxu0 0.0
    %300 = vmatpush2.msra.mxu0 0.0
    %301 = vmatprep.subr.mxu0 0.0
    %302 = vmatpush2.msra.mxu0 0.0
    %303 = vmatprep.subr.mxu0 0.0
    %304 = vmatpush2.msra.mxu0 0.0
    %305 = vmatprep.subr.mxu0 0.0
    %306 = vmatpush2.msra.mxu0 0.0
    %307 = vmatprep.subr.mxu0 0.0
    %308 = vmatpush2.msra.mxu0 0.0
    %309 = vmatprep.subr.mxu0 0.0
    %310 = vmatpush2.msra.mxu0 0.0
    %311 = vmatprep.subr.mxu0 0.0
    %312 = vmatpush2.msra.mxu0 0.0
    %313 = vmatprep.mubr.f32.mxu0 0.0
    %314 = vmatmul.mubr.f32.gmra.mxu0 %v91
    %v315 = vpop.f32.mrf.mxu0
    %v316 = vadd.f32 %v169, %v315
    %v317 = vpop.f32.mrf.mxu0
    %v318 = vadd.f32 %v173, %v317
    %319 = vdwg.mxu0
    %v320 = vmax.f32 %v245, 0.0
    %v321 = vmax.f32 %v247, 0.0
    %v322 = vmax.f32 %v316, 0.0
    %v323 = vmax.f32 %v318, 0.0
    %v324 = vld [vmem:[#allocation8] sm:$0xff]
    %v325 = vld [vmem:[#allocation8 + $0x8] sm:$0xff]
    %v326 = vld [vmem:[#allocation8 + $0x10] sm:$0xff]
    %v327 = vld [vmem:[#allocation8 + $0x18] sm:$0xff]
    %v328 = vld [vmem:[#allocation8 + $0x20] sm:$0xff]
    %v329 = vld [vmem:[#allocation8 + $0x28] sm:$0xff]
    %v330 = vld [vmem:[#allocation8 + $0x30] sm:$0xff]
    %v331 = vld [vmem:[#allocation8 + $0x38] sm:$0xff]
    %v332 = vld [vmem:[#allocation8 + $0x40] sm:$0xff]
    %v333 = vld [vmem:[#allocation8 + $0x48] sm:$0xff]
    %v334 = vld [vmem:[#allocation8 + $0x50] sm:$0xff]
    %v335 = vld [vmem:[#allocation8 + $0x58] sm:$0xff]
    %v336 = vld [vmem:[#allocation8 + $0x60] sm:$0xff]
    %v337 = vld [vmem:[#allocation8 + $0x68] sm:$0xff]
    %v338 = vld [vmem:[#allocation8 + $0x70] sm:$0xff]
    %v339 = vld [vmem:[#allocation8 + $0x78] sm:$0xff]
    %v340 = vld [vmem:[#allocation8 + $0x80] sm:$0xff]
    %v341 = vld [vmem:[#allocation8 + $0x88] sm:$0xff]
    %v342 = vld [vmem:[#allocation8 + $0x90] sm:$0xff]
    %v343 = vld [vmem:[#allocation8 + $0x98] sm:$0xff]
    %v344 = vld [vmem:[#allocation8 + $0xa0] sm:$0xff]
    %v345 = vld [vmem:[#allocation8 + $0xa8] sm:$0xff]
    %v346 = vld [vmem:[#allocation8 + $0xb0] sm:$0xff]
    %v347 = vld [vmem:[#allocation8 + $0xb8] sm:$0xff]
    %v348 = vld [vmem:[#allocation8 + $0xc0] sm:$0xff]
    %v349 = vld [vmem:[#allocation8 + $0xc8] sm:$0xff]
    %v350 = vld [vmem:[#allocation8 + $0xd0] sm:$0xff]
    %v351 = vld [vmem:[#allocation8 + $0xd8] sm:$0xff]
    %v352 = vld [vmem:[#allocation8 + $0xe0] sm:$0xff]
    %v353 = vld [vmem:[#allocation8 + $0xe8] sm:$0xff]
    %v354 = vld [vmem:[#allocation8 + $0xf0] sm:$0xff]
    %v355 = vld [vmem:[#allocation8 + $0xf8] sm:$0xff]
    %v356 = vld [vmem:[#allocation8 + $0x100] sm:$0xff]
    %v357 = vld [vmem:[#allocation8 + $0x108] sm:$0xff]
    %v358 = vld [vmem:[#allocation8 + $0x110] sm:$0xff]
    %v359 = vld [vmem:[#allocation8 + $0x118] sm:$0xff]
    %v360 = vld [vmem:[#allocation8 + $0x120] sm:$0xff]
    %v361 = vld [vmem:[#allocation8 + $0x128] sm:$0xff]
    %v362 = vld [vmem:[#allocation8 + $0x130] sm:$0xff]
    %v363 = vld [vmem:[#allocation8 + $0x138] sm:$0xff]
    %v364 = vld [vmem:[#allocation8 + $0x140] sm:$0xff]
    %v365 = vld [vmem:[#allocation8 + $0x148] sm:$0xff]
    %v366 = vld [vmem:[#allocation8 + $0x150] sm:$0xff]
    %v367 = vld [vmem:[#allocation8 + $0x158] sm:$0xff]
    %v368 = vld [vmem:[#allocation8 + $0x160] sm:$0xff]
    %v369 = vld [vmem:[#allocation8 + $0x168] sm:$0xff]
    %v370 = vld [vmem:[#allocation8 + $0x170] sm:$0xff]
    %v371 = vld [vmem:[#allocation8 + $0x178] sm:$0xff]
    %v372 = vld [vmem:[#allocation8 + $0x180] sm:$0xff]
    %v373 = vld [vmem:[#allocation8 + $0x188] sm:$0xff]
    %v374 = vld [vmem:[#allocation8 + $0x190] sm:$0xff]
    %v375 = vld [vmem:[#allocation8 + $0x198] sm:$0xff]
    %v376 = vld [vmem:[#allocation8 + $0x1a0] sm:$0xff]
    %v377 = vld [vmem:[#allocation8 + $0x1a8] sm:$0xff]
    %v378 = vld [vmem:[#allocation8 + $0x1b0] sm:$0xff]
    %v379 = vld [vmem:[#allocation8 + $0x1b8] sm:$0xff]
    %v380 = vld [vmem:[#allocation8 + $0x1c0] sm:$0xff]
    %v381 = vld [vmem:[#allocation8 + $0x1c8] sm:$0xff]
    %v382 = vld [vmem:[#allocation8 + $0x1d0] sm:$0xff]
    %v383 = vld [vmem:[#allocation8 + $0x1d8] sm:$0xff]
    %v384 = vld [vmem:[#allocation8 + $0x1e0] sm:$0xff]
    %v385 = vld [vmem:[#allocation8 + $0x1e8] sm:$0xff]
    %v386 = vld [vmem:[#allocation8 + $0x1f0] sm:$0xff]
    %v387 = vld [vmem:[#allocation8 + $0x1f8] sm:$0xff]
    %v388 = vld [vmem:[#allocation8 + $0x200] sm:$0xff]
    %v389 = vld [vmem:[#allocation8 + $0x208] sm:$0xff]
    %v390 = vld [vmem:[#allocation8 + $0x210] sm:$0xff]
    %v391 = vld [vmem:[#allocation8 + $0x218] sm:$0xff]
    %v392 = vld [vmem:[#allocation8 + $0x220] sm:$0xff]
    %v393 = vld [vmem:[#allocation8 + $0x228] sm:$0xff]
    %v394 = vld [vmem:[#allocation8 + $0x230] sm:$0xff]
    %v395 = vld [vmem:[#allocation8 + $0x238] sm:$0xff]
    %v396 = vld [vmem:[#allocation8 + $0x240] sm:$0xff]
    %v397 = vld [vmem:[#allocation8 + $0x248] sm:$0xff]
    %v398 = vld [vmem:[#allocation8 + $0x250] sm:$0xff]
    %v399 = vld [vmem:[#allocation8 + $0x258] sm:$0xff]
    %v400 = vld [vmem:[#allocation8 + $0x260] sm:$0xff]
    %v401 = vld [vmem:[#allocation8 + $0x268] sm:$0xff]
    %v402 = vld [vmem:[#allocation8 + $0x270] sm:$0xff]
    %v403 = vld [vmem:[#allocation8 + $0x278] sm:$0xff]
    %v404 = vld [vmem:[#allocation8 + $0x280] sm:$0xff]
    %v405 = vld [vmem:[#allocation8 + $0x288] sm:$0xff]
    %v406 = vld [vmem:[#allocation8 + $0x290] sm:$0xff]
    %v407 = vld [vmem:[#allocation8 + $0x298] sm:$0xff]
    %v408 = vld [vmem:[#allocation8 + $0x2a0] sm:$0xff]
    %v409 = vld [vmem:[#allocation8 + $0x2a8] sm:$0xff]
    %v410 = vld [vmem:[#allocation8 + $0x2b0] sm:$0xff]
    %v411 = vld [vmem:[#allocation8 + $0x2b8] sm:$0xff]
    %v412 = vld [vmem:[#allocation8 + $0x2c0] sm:$0xff]
    %v413 = vld [vmem:[#allocation8 + $0x2c8] sm:$0xff]
    %v414 = vld [vmem:[#allocation8 + $0x2d0] sm:$0xff]
    %v415 = vld [vmem:[#allocation8 + $0x2d8] sm:$0xff]
    %v416 = vld [vmem:[#allocation8 + $0x2e0] sm:$0xff]
    %v417 = vld [vmem:[#allocation8 + $0x2e8] sm:$0xff]
    %v418 = vld [vmem:[#allocation8 + $0x2f0] sm:$0xff]
    %v419 = vld [vmem:[#allocation8 + $0x2f8] sm:$0xff]
    %v420 = vld [vmem:[#allocation8 + $0x300] sm:$0xff]
    %v421 = vld [vmem:[#allocation8 + $0x308] sm:$0xff]
    %v422 = vld [vmem:[#allocation8 + $0x310] sm:$0xff]
    %v423 = vld [vmem:[#allocation8 + $0x318] sm:$0xff]
    %v424 = vld [vmem:[#allocation8 + $0x320] sm:$0xff]
    %v425 = vld [vmem:[#allocation8 + $0x328] sm:$0xff]
    %v426 = vld [vmem:[#allocation8 + $0x330] sm:$0xff]
    %v427 = vld [vmem:[#allocation8 + $0x338] sm:$0xff]
    %v428 = vld [vmem:[#allocation8 + $0x340] sm:$0xff]
    %v429 = vld [vmem:[#allocation8 + $0x348] sm:$0xff]
    %v430 = vld [vmem:[#allocation8 + $0x350] sm:$0xff]
    %v431 = vld [vmem:[#allocation8 + $0x358] sm:$0xff]
    %v432 = vld [vmem:[#allocation8 + $0x360] sm:$0xff]
    %v433 = vld [vmem:[#allocation8 + $0x368] sm:$0xff]
    %v434 = vld [vmem:[#allocation8 + $0x370] sm:$0xff]
    %v435 = vld [vmem:[#allocation8 + $0x378] sm:$0xff]
    %v436 = vld [vmem:[#allocation8 + $0x380] sm:$0xff]
    %v437 = vld [vmem:[#allocation8 + $0x388] sm:$0xff]
    %v438 = vld [vmem:[#allocation8 + $0x390] sm:$0xff]
    %v439 = vld [vmem:[#allocation8 + $0x398] sm:$0xff]
    %v440 = vld [vmem:[#allocation8 + $0x3a0] sm:$0xff]
    %v441 = vld [vmem:[#allocation8 + $0x3a8] sm:$0xff]
    %v442 = vld [vmem:[#allocation8 + $0x3b0] sm:$0xff]
    %v443 = vld [vmem:[#allocation8 + $0x3b8] sm:$0xff]
    %v444 = vld [vmem:[#allocation8 + $0x3c0] sm:$0xff]
    %v445 = vld [vmem:[#allocation8 + $0x3c8] sm:$0xff]
    %v446 = vld [vmem:[#allocation8 + $0x3d0] sm:$0xff]
    %v447 = vld [vmem:[#allocation8 + $0x3d8] sm:$0xff]
    %v448 = vld [vmem:[#allocation8 + $0x3e0] sm:$0xff]
    %v449 = vld [vmem:[#allocation8 + $0x3e8] sm:$0xff]
    %v450 = vld [vmem:[#allocation8 + $0x3f0] sm:$0xff]
    %v451 = vld [vmem:[#allocation8 + $0x3f8] sm:$0xff]
    %v452 = vld [vmem:[#allocation8 + $0x400] sm:$0xff]
    %v453 = vld [vmem:[#allocation8 + $0x408] sm:$0xff]
    %v454 = vld [vmem:[#allocation8 + $0x410] sm:$0xff]
    %v455 = vld [vmem:[#allocation8 + $0x418] sm:$0xff]
    %v456 = vld [vmem:[#allocation8 + $0x420] sm:$0xff]
    %v457 = vld [vmem:[#allocation8 + $0x428] sm:$0xff]
    %v458 = vld [vmem:[#allocation8 + $0x430] sm:$0xff]
    %v459 = vld [vmem:[#allocation8 + $0x438] sm:$0xff]
    %v460 = vld [vmem:[#allocation8 + $0x440] sm:$0xff]
    %v461 = vld [vmem:[#allocation8 + $0x448] sm:$0xff]
    %v462 = vld [vmem:[#allocation8 + $0x450] sm:$0xff]
    %v463 = vld [vmem:[#allocation8 + $0x458] sm:$0xff]
    %v464 = vld [vmem:[#allocation8 + $0x460] sm:$0xff]
    %v465 = vld [vmem:[#allocation8 + $0x468] sm:$0xff]
    %v466 = vld [vmem:[#allocation8 + $0x470] sm:$0xff]
    %v467 = vld [vmem:[#allocation8 + $0x478] sm:$0xff]
    %v468 = vld [vmem:[#allocation8 + $0x480] sm:$0xff]
    %v469 = vld [vmem:[#allocation8 + $0x488] sm:$0xff]
    %v470 = vld [vmem:[#allocation8 + $0x490] sm:$0xff]
    %v471 = vld [vmem:[#allocation8 + $0x498] sm:$0xff]
    %v472 = vld [vmem:[#allocation8 + $0x4a0] sm:$0xff]
    %v473 = vld [vmem:[#allocation8 + $0x4a8] sm:$0xff]
    %v474 = vld [vmem:[#allocation8 + $0x4b0] sm:$0xff]
    %v475 = vld [vmem:[#allocation8 + $0x4b8] sm:$0xff]
    %v476 = vld [vmem:[#allocation8 + $0x4c0] sm:$0xff]
    %v477 = vld [vmem:[#allocation8 + $0x4c8] sm:$0xff]
    %v478 = vld [vmem:[#allocation8 + $0x4d0] sm:$0xff]
    %v479 = vld [vmem:[#allocation8 + $0x4d8] sm:$0xff]
    %v480 = vld [vmem:[#allocation8 + $0x4e0] sm:$0xff]
    %v481 = vld [vmem:[#allocation8 + $0x4e8] sm:$0xff]
    %v482 = vld [vmem:[#allocation8 + $0x4f0] sm:$0xff]
    %v483 = vld [vmem:[#allocation8 + $0x4f8] sm:$0xff]
    %v484 = vld [vmem:[#allocation8 + $0x500] sm:$0xff]
    %v485 = vld [vmem:[#allocation8 + $0x508] sm:$0xff]
    %v486 = vld [vmem:[#allocation8 + $0x510] sm:$0xff]
    %v487 = vld [vmem:[#allocation8 + $0x518] sm:$0xff]
    %v488 = vld [vmem:[#allocation8 + $0x520] sm:$0xff]
    %v489 = vld [vmem:[#allocation8 + $0x528] sm:$0xff]
    %v490 = vld [vmem:[#allocation8 + $0x530] sm:$0xff]
    %v491 = vld [vmem:[#allocation8 + $0x538] sm:$0xff]
    %v492 = vld [vmem:[#allocation8 + $0x540] sm:$0xff]
    %v493 = vld [vmem:[#allocation8 + $0x548] sm:$0xff]
    %v494 = vld [vmem:[#allocation8 + $0x550] sm:$0xff]
    %v495 = vld [vmem:[#allocation8 + $0x558] sm:$0xff]
    %v496 = vld [vmem:[#allocation8 + $0x560] sm:$0xff]
    %v497 = vld [vmem:[#allocation8 + $0x568] sm:$0xff]
    %v498 = vld [vmem:[#allocation8 + $0x570] sm:$0xff]
    %v499 = vld [vmem:[#allocation8 + $0x578] sm:$0xff]
    %v500 = vld [vmem:[#allocation8 + $0x580] sm:$0xff]
    %v501 = vld [vmem:[#allocation8 + $0x588] sm:$0xff]
    %v502 = vld [vmem:[#allocation8 + $0x590] sm:$0xff]
    %v503 = vld [vmem:[#allocation8 + $0x598] sm:$0xff]
    %v504 = vld [vmem:[#allocation8 + $0x5a0] sm:$0xff]
    %v505 = vld [vmem:[#allocation8 + $0x5a8] sm:$0xff]
    %v506 = vld [vmem:[#allocation8 + $0x5b0] sm:$0xff]
    %v507 = vld [vmem:[#allocation8 + $0x5b8] sm:$0xff]
    %v508 = vld [vmem:[#allocation8 + $0x5c0] sm:$0xff]
    %v509 = vld [vmem:[#allocation8 + $0x5c8] sm:$0xff]
    %v510 = vld [vmem:[#allocation8 + $0x5d0] sm:$0xff]
    %v511 = vld [vmem:[#allocation8 + $0x5d8] sm:$0xff]
    %v512 = vld [vmem:[#allocation8 + $0x5e0] sm:$0xff]
    %v513 = vld [vmem:[#allocation8 + $0x5e8] sm:$0xff]
    %v514 = vld [vmem:[#allocation8 + $0x5f0] sm:$0xff]
    %v515 = vld [vmem:[#allocation8 + $0x5f8] sm:$0xff]
    %v516 = vld [vmem:[%s4] sm:$0x7]
    %v518 = vlaneseq
    %v519 = vshrl.u32 %v518, 7
    %v520 = vsub.s32 0, %v519
    %v521 = vrot.slane %v516, %v520
    %v522 = vlaneseq
    %v523 = vshrl.u32 %v522, 7
    %v524 = vsub.s32 1, %v523
    %v525 = vrot.slane %v516, %v524
    %v526 = vlaneseq
    %v527 = vshrl.u32 %v526, 7
    %v528 = vsub.s32 2, %v527
    %v529 = vrot.slane %v516, %v528
    %533 = vmatprep.subr.mxu0 %v370
    %534 = vmatpush1.msra.mxu0 %v369
    %535 = vmatprep.subr.mxu0 %v367
    %536 = vmatpush1.msra.mxu0 %v366
    %537 = vmatprep.subr.mxu0 %v364
    %538 = vmatpush1.msra.mxu0 %v363
    %539 = vmatprep.subr.mxu0 %v361
    %540 = vmatpush1.msra.mxu0 %v360
    %541 = vmatprep.subr.mxu0 %v358
    %542 = vmatpush1.msra.mxu0 %v357
    %543 = vmatprep.subr.mxu0 %v355
    %544 = vmatpush1.msra.mxu0 %v354
    %545 = vmatprep.subr.mxu0 %v352
    %546 = vmatpush1.msra.mxu0 %v351
    %547 = vmatprep.subr.mxu0 %v349
    %548 = vmatpush1.msra.mxu0 %v348
    %549 = vmatprep.subr.mxu0 %v346
    %550 = vmatpush1.msra.mxu0 %v345
    %551 = vmatprep.subr.mxu0 %v343
    %552 = vmatpush1.msra.mxu0 %v342
    %553 = vmatprep.subr.mxu0 %v340
    %554 = vmatpush1.msra.mxu0 %v339
    %555 = vmatprep.subr.mxu0 %v337
    %556 = vmatpush1.msra.mxu0 %v336
    %557 = vmatprep.subr.mxu0 %v334
    %558 = vmatpush1.msra.mxu0 %v333
    %559 = vmatprep.subr.mxu0 %v331
    %560 = vmatpush1.msra.mxu0 %v330
    %561 = vmatprep.subr.mxu0 %v328
    %562 = vmatpush1.msra.mxu0 %v327
    %563 = vmatprep.subr.mxu0 %v325
    %564 = vmatpush1.msra.mxu0 %v324
    %565 = vmatprep.subr.mxu0 %v418
    %566 = vmatpush2.msra.mxu0 %v417
    %567 = vmatprep.subr.mxu0 %v415
    %568 = vmatpush2.msra.mxu0 %v414
    %569 = vmatprep.subr.mxu0 %v412
    %570 = vmatpush2.msra.mxu0 %v411
    %571 = vmatprep.subr.mxu0 %v409
    %572 = vmatpush2.msra.mxu0 %v408
    %573 = vmatprep.subr.mxu0 %v406
    %574 = vmatpush2.msra.mxu0 %v405
    %575 = vmatprep.subr.mxu0 %v403
    %576 = vmatpush2.msra.mxu0 %v402
    %577 = vmatprep.subr.mxu0 %v400
    %578 = vmatpush2.msra.mxu0 %v399
    %579 = vmatprep.subr.mxu0 %v397
    %580 = vmatpush2.msra.mxu0 %v396
    %581 = vmatprep.subr.mxu0 %v394
    %582 = vmatpush2.msra.mxu0 %v393
    %583 = vmatprep.subr.mxu0 %v391
    %584 = vmatpush2.msra.mxu0 %v390
    %585 = vmatprep.subr.mxu0 %v388
    %586 = vmatpush2.msra.mxu0 %v387
    %587 = vmatprep.subr.mxu0 %v385
    %588 = vmatpush2.msra.mxu0 %v384
    %589 = vmatprep.subr.mxu0 %v382
    %590 = vmatpush2.msra.mxu0 %v381
    %591 = vmatprep.subr.mxu0 %v379
    %592 = vmatpush2.msra.mxu0 %v378
    %593 = vmatprep.subr.mxu0 %v376
    %594 = vmatpush2.msra.mxu0 %v375
    %595 = vmatprep.subr.mxu0 %v373
    %596 = vmatpush2.msra.mxu0 %v372
    %597 = vmatprep.mubr.f32.mxu0 %v321
    %598 = vmatmul.mubr.f32.gmra.mxu0 %v320
    %v599 = vpop.f32.mrf.mxu0
    %v600 = vadd.f32 %v521, %v599
    %v601 = vpop.f32.mrf.mxu0
    %v602 = vadd.f32 %v525, %v601
    %603 = vdwg.mxu0
    %604 = vmatprep.subr.mxu0 %v466
    %605 = vmatpush1.msra.mxu0 %v465
    %606 = vmatprep.subr.mxu0 %v463
    %607 = vmatpush1.msra.mxu0 %v462
    %608 = vmatprep.subr.mxu0 %v460
    %609 = vmatpush1.msra.mxu0 %v459
    %610 = vmatprep.subr.mxu0 %v457
    %611 = vmatpush1.msra.mxu0 %v456
    %612 = vmatprep.subr.mxu0 %v454
    %613 = vmatpush1.msra.mxu0 %v453
    %614 = vmatprep.subr.mxu0 %v451
    %615 = vmatpush1.msra.mxu0 %v450
    %616 = vmatprep.subr.mxu0 %v448
    %617 = vmatpush1.msra.mxu0 %v447
    %618 = vmatprep.subr.mxu0 %v445
    %619 = vmatpush1.msra.mxu0 %v444
    %620 = vmatprep.subr.mxu0 %v442
    %621 = vmatpush1.msra.mxu0 %v441
    %622 = vmatprep.subr.mxu0 %v439
    %623 = vmatpush1.msra.mxu0 %v438
    %624 = vmatprep.subr.mxu0 %v436
    %625 = vmatpush1.msra.mxu0 %v435
    %626 = vmatprep.subr.mxu0 %v433
    %627 = vmatpush1.msra.mxu0 %v432
    %628 = vmatprep.subr.mxu0 %v430
    %629 = vmatpush1.msra.mxu0 %v429
    %630 = vmatprep.subr.mxu0 %v427
    %631 = vmatpush1.msra.mxu0 %v426
    %632 = vmatprep.subr.mxu0 %v424
    %633 = vmatpush1.msra.mxu0 %v423
    %634 = vmatprep.subr.mxu0 %v421
    %635 = vmatpush1.msra.mxu0 %v420
    %636 = vmatprep.subr.mxu0 %v514
    %637 = vmatpush2.msra.mxu0 %v513
    %638 = vmatprep.subr.mxu0 %v511
    %639 = vmatpush2.msra.mxu0 %v510
    %640 = vmatprep.subr.mxu0 %v508
    %641 = vmatpush2.msra.mxu0 %v507
    %642 = vmatprep.subr.mxu0 %v505
    %643 = vmatpush2.msra.mxu0 %v504
    %644 = vmatprep.subr.mxu0 %v502
    %645 = vmatpush2.msra.mxu0 %v501
    %646 = vmatprep.subr.mxu0 %v499
    %647 = vmatpush2.msra.mxu0 %v498
    %648 = vmatprep.subr.mxu0 %v496
    %649 = vmatpush2.msra.mxu0 %v495
    %650 = vmatprep.subr.mxu0 %v493
    %651 = vmatpush2.msra.mxu0 %v492
    %652 = vmatprep.subr.mxu0 %v490
    %653 = vmatpush2.msra.mxu0 %v489
    %654 = vmatprep.subr.mxu0 %v487
    %655 = vmatpush2.msra.mxu0 %v486
    %656 = vmatprep.subr.mxu0 %v484
    %657 = vmatpush2.msra.mxu0 %v483
    %658 = vmatprep.subr.mxu0 %v481
    %659 = vmatpush2.msra.mxu0 %v480
    %660 = vmatprep.subr.mxu0 %v478
    %661 = vmatpush2.msra.mxu0 %v477
    %662 = vmatprep.subr.mxu0 %v475
    %663 = vmatpush2.msra.mxu0 %v474
    %664 = vmatprep.subr.mxu0 %v472
    %665 = vmatpush2.msra.mxu0 %v471
    %666 = vmatprep.subr.mxu0 %v469
    %667 = vmatpush2.msra.mxu0 %v468
    %668 = vmatprep.mubr.f32.mxu0 %v323
    %669 = vmatmul.mubr.f32.gmra.mxu0 %v322
    %v670 = vpop.f32.mrf.mxu0
    %v671 = vadd.f32 %v600, %v670
    %v672 = vpop.f32.mrf.mxu0
    %v673 = vadd.f32 %v602, %v672
    %674 = vdwg.mxu0
    %675 = vmatprep.subr.mxu0 0.0
    %676 = vmatpush1.msra.mxu0 %v371
    %677 = vmatprep.subr.mxu0 0.0
    %678 = vmatpush1.msra.mxu0 %v368
    %679 = vmatprep.subr.mxu0 0.0
    %680 = vmatpush1.msra.mxu0 %v365
    %681 = vmatprep.subr.mxu0 0.0
    %682 = vmatpush1.msra.mxu0 %v362
    %683 = vmatprep.subr.mxu0 0.0
    %684 = vmatpush1.msra.mxu0 %v359
    %685 = vmatprep.subr.mxu0 0.0
    %686 = vmatpush1.msra.mxu0 %v356
    %687 = vmatprep.subr.mxu0 0.0
    %688 = vmatpush1.msra.mxu0 %v353
    %689 = vmatprep.subr.mxu0 0.0
    %690 = vmatpush1.msra.mxu0 %v350
    %691 = vmatprep.subr.mxu0 0.0
    %692 = vmatpush1.msra.mxu0 %v347
    %693 = vmatprep.subr.mxu0 0.0
    %694 = vmatpush1.msra.mxu0 %v344
    %695 = vmatprep.subr.mxu0 0.0
    %696 = vmatpush1.msra.mxu0 %v341
    %697 = vmatprep.subr.mxu0 0.0
    %698 = vmatpush1.msra.mxu0 %v338
    %699 = vmatprep.subr.mxu0 0.0
    %700 = vmatpush1.msra.mxu0 %v335
    %701 = vmatprep.subr.mxu0 0.0
    %702 = vmatpush1.msra.mxu0 %v332
    %703 = vmatprep.subr.mxu0 0.0
    %704 = vmatpush1.msra.mxu0 %v329
    %705 = vmatprep.subr.mxu0 0.0
    %706 = vmatpush1.msra.mxu0 %v326
    %707 = vmatprep.subr.mxu0 0.0
    %708 = vmatpush2.msra.mxu0 %v419
    %709 = vmatprep.subr.mxu0 0.0
    %710 = vmatpush2.msra.mxu0 %v416
    %711 = vmatprep.subr.mxu0 0.0
    %712 = vmatpush2.msra.mxu0 %v413
    %713 = vmatprep.subr.mxu0 0.0
    %714 = vmatpush2.msra.mxu0 %v410
    %715 = vmatprep.subr.mxu0 0.0
    %716 = vmatpush2.msra.mxu0 %v407
    %717 = vmatprep.subr.mxu0 0.0
    %718 = vmatpush2.msra.mxu0 %v404
    %719 = vmatprep.subr.mxu0 0.0
    %720 = vmatpush2.msra.mxu0 %v401
    %721 = vmatprep.subr.mxu0 0.0
    %722 = vmatpush2.msra.mxu0 %v398
    %723 = vmatprep.subr.mxu0 0.0
    %724 = vmatpush2.msra.mxu0 %v395
    %725 = vmatprep.subr.mxu0 0.0
    %726 = vmatpush2.msra.mxu0 %v392
    %727 = vmatprep.subr.mxu0 0.0
    %728 = vmatpush2.msra.mxu0 %v389
    %729 = vmatprep.subr.mxu0 0.0
    %730 = vmatpush2.msra.mxu0 %v386
    %731 = vmatprep.subr.mxu0 0.0
    %732 = vmatpush2.msra.mxu0 %v383
    %733 = vmatprep.subr.mxu0 0.0
    %734 = vmatpush2.msra.mxu0 %v380
    %735 = vmatprep.subr.mxu0 0.0
    %736 = vmatpush2.msra.mxu0 %v377
    %737 = vmatprep.subr.mxu0 0.0
    %738 = vmatpush2.msra.mxu0 %v374
    %739 = vmatprep.mubr.f32.mxu0 %v321
    %740 = vmatmul.mubr.f32.gmra.mxu0 %v320
    %v741 = vpop.f32.mrf.mxu0
    %v742 = vadd.f32 %v529, %v741
    %v743 = vpop.f32.mrf.mxu0
    %744 = vdwg.mxu0
    %745 = vmatprep.subr.mxu0 0.0
    %746 = vmatpush1.msra.mxu0 %v467
    %747 = vmatprep.subr.mxu0 0.0
    %748 = vmatpush1.msra.mxu0 %v464
    %749 = vmatprep.subr.mxu0 0.0
    %750 = vmatpush1.msra.mxu0 %v461
    %751 = vmatprep.subr.mxu0 0.0
    %752 = vmatpush1.msra.mxu0 %v458
    %753 = vmatprep.subr.mxu0 0.0
    %754 = vmatpush1.msra.mxu0 %v455
    %755 = vmatprep.subr.mxu0 0.0
    %756 = vmatpush1.msra.mxu0 %v452
    %757 = vmatprep.subr.mxu0 0.0
    %758 = vmatpush1.msra.mxu0 %v449
    %759 = vmatprep.subr.mxu0 0.0
    %760 = vmatpush1.msra.mxu0 %v446
    %761 = vmatprep.subr.mxu0 0.0
    %762 = vmatpush1.msra.mxu0 %v443
    %763 = vmatprep.subr.mxu0 0.0
    %764 = vmatpush1.msra.mxu0 %v440
    %765 = vmatprep.subr.mxu0 0.0
    %766 = vmatpush1.msra.mxu0 %v437
    %767 = vmatprep.subr.mxu0 0.0
    %768 = vmatpush1.msra.mxu0 %v434
    %769 = vmatprep.subr.mxu0 0.0
    %770 = vmatpush1.msra.mxu0 %v431
    %771 = vmatprep.subr.mxu0 0.0
    %772 = vmatpush1.msra.mxu0 %v428
    %773 = vmatprep.subr.mxu0 0.0
    %774 = vmatpush1.msra.mxu0 %v425
    %775 = vmatprep.subr.mxu0 0.0
    %776 = vmatpush1.msra.mxu0 %v422
    %777 = vmatprep.subr.mxu0 0.0
    %778 = vmatpush2.msra.mxu0 %v515
    %779 = vmatprep.subr.mxu0 0.0
    %780 = vmatpush2.msra.mxu0 %v512
    %781 = vmatprep.subr.mxu0 0.0
    %782 = vmatpush2.msra.mxu0 %v509
    %783 = vmatprep.subr.mxu0 0.0
    %784 = vmatpush2.msra.mxu0 %v506
    %785 = vmatprep.subr.mxu0 0.0
    %786 = vmatpush2.msra.mxu0 %v503
    %787 = vmatprep.subr.mxu0 0.0
    %788 = vmatpush2.msra.mxu0 %v500
    %789 = vmatprep.subr.mxu0 0.0
    %790 = vmatpush2.msra.mxu0 %v497
    %791 = vmatprep.subr.mxu0 0.0
    %792 = vmatpush2.msra.mxu0 %v494
    %793 = vmatprep.subr.mxu0 0.0
    %794 = vmatpush2.msra.mxu0 %v491
    %795 = vmatprep.subr.mxu0 0.0
    %796 = vmatpush2.msra.mxu0 %v488
    %797 = vmatprep.subr.mxu0 0.0
    %798 = vmatpush2.msra.mxu0 %v485
    %799 = vmatprep.subr.mxu0 0.0
    %800 = vmatpush2.msra.mxu0 %v482
    %801 = vmatprep.subr.mxu0 0.0
    %802 = vmatpush2.msra.mxu0 %v479
    %803 = vmatprep.subr.mxu0 0.0
    %804 = vmatpush2.msra.mxu0 %v476
    %805 = vmatprep.subr.mxu0 0.0
    %806 = vmatpush2.msra.mxu0 %v473
    %807 = vmatprep.subr.mxu0 0.0
    %808 = vmatpush2.msra.mxu0 %v470
    %809 = vmatprep.mubr.f32.mxu0 %v323
    %810 = vmatmul.mubr.f32.gmra.mxu0 %v322
    %v811 = vpop.f32.mrf.mxu0
    %v812 = vadd.f32 %v742, %v811
    %v813 = vpop.f32.mrf.mxu0
    %814 = vdwg.mxu0
    %v815 = vmax.f32 %v671, 0.0
    %v816 = vmax.f32 %v673, 0.0
    %v817 = vmax.f32 %v812, 0.0
    %v818 = vld [vmem:[#allocation10] sm:$0xff]
    %v819 = vld [vmem:[#allocation10 + $0x8] sm:$0xff]
    %v820 = vld [vmem:[#allocation10 + $0x10] sm:$0xff]
    %v821 = vld [vmem:[#allocation10 + $0x18] sm:$0xff]
    %v822 = vld [vmem:[#allocation10 + $0x20] sm:$0xff]
    %v823 = vld [vmem:[#allocation10 + $0x28] sm:$0xff]
    %v824 = vld [vmem:[#allocation10 + $0x30] sm:$0xff]
    %v825 = vld [vmem:[#allocation10 + $0x38] sm:$0xff]
    %v826 = vld [vmem:[#allocation10 + $0x40] sm:$0xff]
    %v827 = vld [vmem:[#allocation10 + $0x48] sm:$0xff]
    %v828 = vld [vmem:[#allocation10 + $0x50] sm:$0xff]
    %v829 = vld [vmem:[#allocation10 + $0x58] sm:$0xff]
    %v830 = vld [vmem:[#allocation10 + $0x60] sm:$0xff]
    %v831 = vld [vmem:[#allocation10 + $0x68] sm:$0xff]
    %v832 = vld [vmem:[#allocation10 + $0x70] sm:$0xff]
    %v833 = vld [vmem:[#allocation10 + $0x78] sm:$0xff]
    %v834 = vld [vmem:[#allocation10 + $0x80] sm:$0xff]
    %v835 = vld [vmem:[#allocation10 + $0x88] sm:$0xff]
    %v836 = vld [vmem:[#allocation10 + $0x90] sm:$0xff]
    %v837 = vld [vmem:[#allocation10 + $0x98] sm:$0xff]
    %v838 = vld [vmem:[#allocation10 + $0xa0] sm:$0xff]
    %v839 = vld [vmem:[#allocation10 + $0xa8] sm:$0xff]
    %v840 = vld [vmem:[#allocation10 + $0xb0] sm:$0xff]
    %v841 = vld [vmem:[#allocation10 + $0xb8] sm:$0xff]
    %v842 = vld [vmem:[#allocation10 + $0xc0] sm:$0xff]
    %v843 = vld [vmem:[#allocation10 + $0xc8] sm:$0xff]
    %v844 = vld [vmem:[#allocation10 + $0xd0] sm:$0xff]
    %v845 = vld [vmem:[#allocation10 + $0xd8] sm:$0xff]
    %v846 = vld [vmem:[#allocation10 + $0xe0] sm:$0xff]
    %v847 = vld [vmem:[#allocation10 + $0xe8] sm:$0xff]
    %v848 = vld [vmem:[#allocation10 + $0xf0] sm:$0xff]
    %v849 = vld [vmem:[#allocation10 + $0xf8] sm:$0xff]
    %v850 = vld [vmem:[#allocation10 + $0x100] sm:$0xff]
    %v851 = vld [vmem:[#allocation10 + $0x108] sm:$0xff]
    %v852 = vld [vmem:[#allocation10 + $0x110] sm:$0xff]
    %v853 = vld [vmem:[#allocation10 + $0x118] sm:$0xff]
    %v854 = vld [vmem:[#allocation10 + $0x120] sm:$0xff]
    %v855 = vld [vmem:[#allocation10 + $0x128] sm:$0xff]
    %v856 = vld [vmem:[#allocation10 + $0x130] sm:$0xff]
    %v857 = vld [vmem:[#allocation10 + $0x138] sm:$0xff]
    %v858 = vld [vmem:[#allocation10 + $0x140] sm:$0xff]
    %v859 = vld [vmem:[#allocation10 + $0x148] sm:$0xff]
    %v860 = vld [vmem:[#allocation10 + $0x150] sm:$0xff]
    %v861 = vld [vmem:[#allocation10 + $0x158] sm:$0xff]
    %v862 = vld [vmem:[#allocation10 + $0x160] sm:$0xff]
    %v863 = vld [vmem:[#allocation10 + $0x168] sm:$0xff]
    %v864 = vld [vmem:[#allocation10 + $0x170] sm:$0xff]
    %v865 = vld [vmem:[#allocation10 + $0x178] sm:$0xff]
    %v866 = vld [vmem:[%s6] sm:$0x1]
    %v868 = vlaneseq
    %v869 = vshrl.u32 %v868, 7
    %v870 = vsub.s32 0, %v869
    %v871 = vrot.slane %v866, %v870
    %873 = vmatprep.subr.mxu0 0.0
    %874 = vmatpush1.msra.mxu0 %v833
    %875 = vmatprep.subr.mxu0 0.0
    %876 = vmatpush1.msra.mxu0 %v832
    %877 = vmatprep.subr.mxu0 0.0
    %878 = vmatpush1.msra.mxu0 %v831
    %879 = vmatprep.subr.mxu0 0.0
    %880 = vmatpush1.msra.mxu0 %v830
    %881 = vmatprep.subr.mxu0 0.0
    %882 = vmatpush1.msra.mxu0 %v829
    %883 = vmatprep.subr.mxu0 0.0
    %884 = vmatpush1.msra.mxu0 %v828
    %885 = vmatprep.subr.mxu0 0.0
    %886 = vmatpush1.msra.mxu0 %v827
    %887 = vmatprep.subr.mxu0 0.0
    %888 = vmatpush1.msra.mxu0 %v826
    %889 = vmatprep.subr.mxu0 0.0
    %890 = vmatpush1.msra.mxu0 %v825
    %891 = vmatprep.subr.mxu0 0.0
    %892 = vmatpush1.msra.mxu0 %v824
    %893 = vmatprep.subr.mxu0 0.0
    %894 = vmatpush1.msra.mxu0 %v823
    %895 = vmatprep.subr.mxu0 0.0
    %896 = vmatpush1.msra.mxu0 %v822
    %897 = vmatprep.subr.mxu0 0.0
    %898 = vmatpush1.msra.mxu0 %v821
    %899 = vmatprep.subr.mxu0 0.0
    %900 = vmatpush1.msra.mxu0 %v820
    %901 = vmatprep.subr.mxu0 0.0
    %902 = vmatpush1.msra.mxu0 %v819
    %903 = vmatprep.subr.mxu0 0.0
    %904 = vmatpush1.msra.mxu0 %v818
    %905 = vmatprep.subr.mxu0 0.0
    %906 = vmatpush2.msra.mxu0 %v849
    %907 = vmatprep.subr.mxu0 0.0
    %908 = vmatpush2.msra.mxu0 %v848
    %909 = vmatprep.subr.mxu0 0.0
    %910 = vmatpush2.msra.mxu0 %v847
    %911 = vmatprep.subr.mxu0 0.0
    %912 = vmatpush2.msra.mxu0 %v846
    %913 = vmatprep.subr.mxu0 0.0
    %914 = vmatpush2.msra.mxu0 %v845
    %915 = vmatprep.subr.mxu0 0.0
    %916 = vmatpush2.msra.mxu0 %v844
    %917 = vmatprep.subr.mxu0 0.0
    %918 = vmatpush2.msra.mxu0 %v843
    %919 = vmatprep.subr.mxu0 0.0
    %920 = vmatpush2.msra.mxu0 %v842
    %921 = vmatprep.subr.mxu0 0.0
    %922 = vmatpush2.msra.mxu0 %v841
    %923 = vmatprep.subr.mxu0 0.0
    %924 = vmatpush2.msra.mxu0 %v840
    %925 = vmatprep.subr.mxu0 0.0
    %926 = vmatpush2.msra.mxu0 %v839
    %927 = vmatprep.subr.mxu0 0.0
    %928 = vmatpush2.msra.mxu0 %v838
    %929 = vmatprep.subr.mxu0 0.0
    %930 = vmatpush2.msra.mxu0 %v837
    %931 = vmatprep.subr.mxu0 0.0
    %932 = vmatpush2.msra.mxu0 %v836
    %933 = vmatprep.subr.mxu0 0.0
    %934 = vmatpush2.msra.mxu0 %v835
    %935 = vmatprep.subr.mxu0 0.0
    %936 = vmatpush2.msra.mxu0 %v834
    %937 = vmatprep.mubr.f32.mxu0 %v816
    %938 = vmatmul.mubr.f32.gmra.mxu0 %v815
    %v939 = vpop.f32.mrf.mxu0
    %v940 = vadd.f32 %v871, %v939
    %v941 = vpop.f32.mrf.mxu0
    %942 = vdwg.mxu0
    %943 = vmatprep.subr.mxu0 0.0
    %944 = vmatpush1.msra.mxu0 %v865
    %945 = vmatprep.subr.mxu0 0.0
    %946 = vmatpush1.msra.mxu0 %v864
    %947 = vmatprep.subr.mxu0 0.0
    %948 = vmatpush1.msra.mxu0 %v863
    %949 = vmatprep.subr.mxu0 0.0
    %950 = vmatpush1.msra.mxu0 %v862
    %951 = vmatprep.subr.mxu0 0.0
    %952 = vmatpush1.msra.mxu0 %v861
    %953 = vmatprep.subr.mxu0 0.0
    %954 = vmatpush1.msra.mxu0 %v860
    %955 = vmatprep.subr.mxu0 0.0
    %956 = vmatpush1.msra.mxu0 %v859
    %957 = vmatprep.subr.mxu0 0.0
    %958 = vmatpush1.msra.mxu0 %v858
    %959 = vmatprep.subr.mxu0 0.0
    %960 = vmatpush1.msra.mxu0 %v857
    %961 = vmatprep.subr.mxu0 0.0
    %962 = vmatpush1.msra.mxu0 %v856
    %963 = vmatprep.subr.mxu0 0.0
    %964 = vmatpush1.msra.mxu0 %v855
    %965 = vmatprep.subr.mxu0 0.0
    %966 = vmatpush1.msra.mxu0 %v854
    %967 = vmatprep.subr.mxu0 0.0
    %968 = vmatpush1.msra.mxu0 %v853
    %969 = vmatprep.subr.mxu0 0.0
    %970 = vmatpush1.msra.mxu0 %v852
    %971 = vmatprep.subr.mxu0 0.0
    %972 = vmatpush1.msra.mxu0 %v851
    %973 = vmatprep.subr.mxu0 0.0
    %974 = vmatpush1.msra.mxu0 %v850
    %975 = vmatprep.subr.mxu0 0.0
    %976 = vmatpush2.msra.mxu0 0.0
    %977 = vmatprep.subr.mxu0 0.0
    %978 = vmatpush2.msra.mxu0 0.0
    %979 = vmatprep.subr.mxu0 0.0
    %980 = vmatpush2.msra.mxu0 0.0
    %981 = vmatprep.subr.mxu0 0.0
    %982 = vmatpush2.msra.mxu0 0.0
    %983 = vmatprep.subr.mxu0 0.0
    %984 = vmatpush2.msra.mxu0 0.0
    %985 = vmatprep.subr.mxu0 0.0
    %986 = vmatpush2.msra.mxu0 0.0
    %987 = vmatprep.subr.mxu0 0.0
    %988 = vmatpush2.msra.mxu0 0.0
    %989 = vmatprep.subr.mxu0 0.0
    %990 = vmatpush2.msra.mxu0 0.0
    %991 = vmatprep.subr.mxu0 0.0
    %992 = vmatpush2.msra.mxu0 0.0
    %993 = vmatprep.subr.mxu0 0.0
    %994 = vmatpush2.msra.mxu0 0.0
    %995 = vmatprep.subr.mxu0 0.0
    %996 = vmatpush2.msra.mxu0 0.0
    %997 = vmatprep.subr.mxu0 0.0
    %998 = vmatpush2.msra.mxu0 0.0
    %999 = vmatprep.subr.mxu0 0.0
    %1000 = vmatpush2.msra.mxu0 0.0
    %1001 = vmatprep.subr.mxu0 0.0
    %1002 = vmatpush2.msra.mxu0 0.0
    %1003 = vmatprep.subr.mxu0 0.0
    %1004 = vmatpush2.msra.mxu0 0.0
    %1005 = vmatprep.subr.mxu0 0.0
    %1006 = vmatpush2.msra.mxu0 0.0
    %1007 = vmatprep.mubr.f32.mxu0 0.0
    %1008 = vmatmul.mubr.f32.gmra.mxu0 %v817
    %v1009 = vpop.f32.mrf.mxu0
    %v1010 = vadd.f32 %v940, %v1009
    %v1011 = vpop.f32.mrf.mxu0
    %1012 = vdwg.mxu0
    %v1013 = vtanh.pop %v1010
    %v1014 = vmul.f32 %v1013, 2.0
    %1015 = vst [vmem:[#allocation11] sm:$0xff] %v1014
    // Predicated region
    $region50: #{tpu_custom_call.1} parent=1 // pred_check
      _
    $region51: #{tpu_custom_call.1} parent=1 // pred_check_branch
      %1017 = sbr.rel (0) target = $region53
    $region52: #{tpu_custom_call.1} parent=1 // pred_region
      %s1019 = ssub.s32 128, 128
      %1020 = vsyncadd [#allocation4], %s1019
      %s1022 = sshll.u32 [#allocation11], 4
      %s1023 = int_to_ptr.vmem [resolvable:$true] %s1022
      %1025 = dma.vmem_to_hbm [thread:$0]  %s1023, 128, %s7, [#allocation4]
    $region53: #{tpu_custom_call.1} parent=1 // pred_fallthru
      _
    // Predicated region
    $region54: #{tpu_custom_call.1} parent=1 // pred_check
      _
    $region55: #{tpu_custom_call.1} parent=1 // pred_check_branch
      %1027 = sbr.rel (0) target = $region57
    $region56: #{tpu_custom_call.1} parent=1 // pred_region
      %1028 = dma.done [#allocation4], 128
    $region57: #{tpu_custom_call.1} parent=1 // pred_fallthru
      _
    %1029 = vsyncpa [#allocation3], 1
    %1030 = vsyncpa [#allocation6], 1
    %1031 = vsyncpa [#allocation9], 1
    %1032 = vsyncpa [#allocation4], 1

</llo_original>
